<compile_context>
chip_gen: v7x
topology: tpu7x:2x2x1
jax: 0.10.0
libtpu: 0.0.40
codegen_flags: <defaults>
</compile_context>

<pallas_src>
import math
import random
from typing import NamedTuple, Optional

import numpy as np
import jax
import jax.numpy as jnp
from jax.experimental import pallas as pl
from jax.experimental.pallas import tpu as pltpu

# ----------------------------- configuration -------------------------------
B = 2                 # batch
C = 1                 # audio channels
HOP = 320             # encoder stride/kernel (fixed by apply_random_masking's *320)
N = 64                # latent frames  (M = B*N = 128 rows)
T = N * HOP           # audio length
D = 32                # latent dim
K_BINS = 16           # quantizer codebook size
H = 64                # wmdecoder hidden dim
NCLS = 2              # watermark classes
F = C * HOP           # raw frame width (320)
FP = 384              # padded frame width (3*128); col F is a constant-1 bias lane
OUTP = 384            # padded audio-frame output width
AUXW = 128            # lane-dense aux slab: [mark(2) | clean(2) | codes(1) | 0...]
HEADW = OUTP + AUXW   # fused head width (512)
SAMPLE_RATE = 16000
FRAME_RATE = SAMPLE_RATE // HOP

# fused-weight column layout of xcat = xf @ Wcat  ([*, 128]):
_DIST0 = 0            # cols  0:16  -> code distances
_HWM0 = K_BINS        # cols 16:48  -> wm_encoder pre-activation
_XW0 = 64             # cols 64:128 -> x@W1w + (W1l[0]-W1l[1])


class QuantizedResult(NamedTuple):
    x: jnp.ndarray                     # reconstructed audio (reassigned by forward)
    codes: jnp.ndarray                 # [B, 1, N] int32
    bandwidth: float


def _round_up(v, m):
    return (v + m - 1) // m * m


# ------------------------------ fused Pallas kernel -------------------------
def _fused_kernel(xf_ref, mcol_ref,
                  wcat_ref, cbq_ref, whead_ref, wc_ref, bhead_ref,
                  out_ref, aux_ref):
    f32 = jnp.float32
    bf16 = jnp.bfloat16

    xf = xf_ref[...]                                             # [tm, FP] bf16 (col F == 1)

    # one wide MXU push over the dominant K=FP contraction
    xcat = jnp.dot(xf, wcat_ref[...], preferred_element_type=f32)  # [tm, 128] f32

    # ---- quantizer: argmin over folded distances ||c_k||^2 - 2 e.c_k ----
    # (bf16 matmul operands; near-ties may differ from an f32 reference)
    d = xcat[:, _DIST0:_DIST0 + K_BINS]                          # [tm, K]
    min_d = jnp.min(d, axis=-1, keepdims=True)
    k_iota = jax.lax.broadcasted_iota(jnp.int32, d.shape, 1)
    cand = jnp.where(d <= min_d, k_iota, K_BINS)
    codes = jnp.minimum(jnp.min(cand, axis=-1, keepdims=True), K_BINS - 1)  # [tm,1]
    onehot = (k_iota == codes).astype(bf16)                      # [tm, K] exact 0/1

    # ---- wmdecoder hidden: onehot@(cb@W1q+b1+W1l1) + mask*(x@W1w + W1l0-W1l1) ----
    hq = jnp.dot(onehot, cbq_ref[...], preferred_element_type=f32)   # [tm, H]
    mask = mcol_ref[...]                                         # [tm, 1] f32 in {0,1}
    h = jnp.maximum(hq + mask * xcat[:, _XW0:_XW0 + H], 0.0)     # f32 VPU (v5e-safe)

    # ---- wm_encoder hidden on the clean audio (z == x, frames reused) ----
    hwm = jnp.maximum(xcat[:, _HWM0:_HWM0 + D], 0.0)             # [tm, D]

    # ---- fused heads: [audio frame | mark logits] from h, clean-mark from hwm ----
    head = (jnp.dot(h.astype(bf16), whead_ref[...], preferred_element_type=f32)
            + bhead_ref[...])                                    # [tm, HEADW]
    aux = head[:, OUTP:] + jnp.dot(hwm.astype(bf16), wc_ref[...],
                                   preferred_element_type=f32)   # [tm, AUXW]

    out_ref[...] = head[:, :OUTP].astype(out_ref.dtype)
    lane = jax.lax.broadcasted_iota(jnp.int32, aux.shape, 1)
    aux_ref[...] = jnp.where(lane == 2 * NCLS, codes.astype(f32), aux)


def fused_forward(xf_p, mcol_p, p, grid, tm):
    tiled = lambda i: (i, 0)
    whole = lambda i: (0, 0)
    mp = xf_p.shape[0]
    weights = (p["wcat"], p["cbq"], p["whead"], p["wc"], p["bhead"])
    in_specs = ([pl.BlockSpec((tm, FP), tiled),
                 pl.BlockSpec((tm, 1), tiled)]
                + [pl.BlockSpec(w.shape, whole) for w in weights])
    return pl.pallas_call(
        _fused_kernel,
        grid=(grid,),
        in_specs=in_specs,
        out_specs=[pl.BlockSpec((tm, OUTP), tiled),
                   pl.BlockSpec((tm, AUXW), tiled)],
        out_shape=[jax.ShapeDtypeStruct((mp, OUTP), jnp.bfloat16),
                   jax.ShapeDtypeStruct((mp, AUXW), jnp.float32)],
        compiler_params=pltpu.CompilerParams(
            dimension_semantics=("parallel",)),   # shards M-tiles on v7x when grid > 1
    )(xf_p, mcol_p, *weights)


# ------------------------------ glue (plain JAX) ------------------------------
def _frames(x):
    """[B, C, T] -> [B*N, C*HOP]."""
    b, c, t = x.shape
    n = t // HOP
    xr = x.reshape(b, c, n, HOP)
    xr = jnp.transpose(xr, (0, 2, 1, 3))
    return xr.reshape(b * n, c * HOP)


def _unframes(of, b, c):
    """[B*N, C*HOP] -> [B, C, N*HOP]."""
    n = of.shape[0] // b
    xr = of.reshape(b, n, c, HOP)
    xr = jnp.transpose(xr, (0, 2, 1, 3))
    return xr.reshape(b, c, n * HOP)


def apply_random_masking(batch_size, n, min_mask_regions=0, max_mask_regions=2,
                         max_mask_fraction=0.8):
    """Faithful numpy replica of WMEncodecModel.apply_random_masking (host logic)."""
    mask = np.zeros((batch_size, n), dtype=np.int64)
    audio_mask = np.ones((batch_size, 1, n * 320), dtype=np.int64)
    for i in range(batch_size):
        num_regions = random.randint(min_mask_regions, max_mask_regions)
        total_masked = 0
        for _ in range(num_regions):
            if total_masked >= int(max_mask_fraction * n):
                break
            mask_len = random.randint(1, int(n * max_mask_fraction))
            if total_masked + mask_len > max_mask_fraction * n:
                mask_len = int(max_mask_fraction * n) - total_masked
            start = random.randint(0, n - mask_len)
            mask[i, start:start + mask_len] = 1
            audio_mask[i, :, start * 320:(start + mask_len) * 320] = 0
            total_masked += mask_len
    return mask, audio_mask


def init_params(key):
    ks = jax.random.split(key, 15)
    r = lambda k, shape: jax.random.normal(k, shape, jnp.float32) / math.sqrt(shape[0])
    sb = lambda k, shape: 0.02 * jax.random.normal(k, shape, jnp.float32)

    We = r(ks[0], (F, D))                       # encoder Conv1d(C, D, HOP, HOP)
    be = sb(ks[1], (D,))
    cb = jax.random.normal(ks[2], (K_BINS, D), jnp.float32)   # VQ codebook
    W1q = r(ks[3], (D, H))                      # wmdecoder: quantized-latent path
    W1l = r(ks[4], (NCLS, H))                   # wmdecoder: label embedding
    W1w = r(ks[5], (F, H))                      # wmdecoder: masked-audio path
    b1 = sb(ks[6], (H,))
    W2 = r(ks[7], (H, F))                       # ConvTranspose1d(H, C, HOP, HOP)
    b2 = sb(ks[8], (F,))
    W3 = r(ks[9], (H, NCLS))                    # watermark-logit head
    b3 = sb(ks[10], (NCLS,))
    Wwe = r(ks[11], (F, D))                     # wm_encoder (strided conv)
    bwe = sb(ks[12], (D,))
    Wp = r(ks[13], (D, NCLS))                   # wm_predictor (1x1 conv)
    bp = sb(ks[14], (NCLS,))

    # --- fused frame weight (single K=384 MXU push) ---
    # encoder folded straight into code distances: d_k = ||c_k||^2 - 2 (x@We + be).c_k
    wdist = -2.0 * (We @ cb.T)                                   # [F, K]
    bdist = jnp.sum(cb * cb, axis=-1) - 2.0 * (be @ cb.T)        # [K]
    dlab = W1l[0] - W1l[1]                                       # label delta, rides ones col
    wcat = jnp.zeros((FP, 128), jnp.float32)
    wcat = wcat.at[:F, _DIST0:_DIST0 + K_BINS].set(wdist)
    wcat = wcat.at[F, _DIST0:_DIST0 + K_BINS].set(bdist)         # row F pairs with xf col F == 1
    wcat = wcat.at[:F, _HWM0:_HWM0 + D].set(Wwe)
    wcat = wcat.at[F, _HWM0:_HWM0 + D].set(bwe)
    wcat = wcat.at[:F, _XW0:_XW0 + H].set(W1w)
    wcat = wcat.at[F, _XW0:_XW0 + H].set(dlab)

    # quantizer gather pre-fold (+ hidden bias + label base, exact since onehot sums to 1)
    cbq = cb @ W1q + b1[None, :] + W1l[1][None, :]               # [K, H]

    # fused heads: audio frame + mark logits from h; clean-mark from hwm
    whead = jnp.zeros((H, HEADW), jnp.float32)
    whead = whead.at[:, :F].set(W2)
    whead = whead.at[:, OUTP:OUTP + NCLS].set(W3)
    wc = jnp.zeros((D, AUXW), jnp.float32)
    wc = wc.at[:, NCLS:2 * NCLS].set(Wp)
    bhead = jnp.zeros((1, HEADW), jnp.float32)
    bhead = bhead.at[0, :F].set(b2)
    bhead = bhead.at[0, OUTP:OUTP + NCLS].set(b3)
    bhead = bhead.at[0, OUTP + NCLS:OUTP + 2 * NCLS].set(bp)

    return {
        "wcat": wcat.astype(jnp.bfloat16),
        "cbq": cbq.astype(jnp.bfloat16),
        "whead": whead.astype(jnp.bfloat16),
        "wc": wc.astype(jnp.bfloat16),
        "bhead": bhead,                          # f32, one lane-dense 512-wide row
    }


def wm_encodec_forward(params, x, renormalize=False):
    """Mirrors WMEncodecModel.forward (causal=False, renormalize=False)."""
    assert x.ndim == 3
    b, c, t = x.shape
    length = t
    scale: Optional[jnp.ndarray] = None          # preprocess: renormalize=False
    n = t // HOP
    m = b * n
    tm = 128 if m % 128 == 0 else min(_round_up(m, 8), 128)
    mp = _round_up(m, tm)
    grid = mp // tm

    # frame the audio once; col F of the padding is a constant-1 bias lane.
    # z == y == x, so this single framed slab feeds encoder, masked-audio path
    # and wm_encoder.  (Padded rows mp>m flow through and are sliced off below.)
    xf = _frames(x)
    xf_p = (jnp.zeros((mp, FP), jnp.float32)
            .at[:m, :F].set(xf)
            .at[:m, F].set(1.0)).astype(jnp.bfloat16)

    # random masking (host logic, Python `random`, deterministic via seed)
    # TODO(synk): Python `random` control flow has no in-kernel equivalent.
    mask_np, audio_mask_np = apply_random_masking(b, n)
    mark_label = jnp.asarray(mask_np, dtype=jnp.int32)                  # [B, N]
    clean_mark_label = jnp.zeros((b, n), dtype=jnp.int32)
    # audio mask is frame-aligned (whole 320-sample regions) -> per-frame scalar
    # that equals 1 - mark_label exactly; no full-resolution mask tensor needed.
    mcol_p = (jnp.zeros((mp, 1), jnp.float32)
              .at[:m, 0].set(1.0 - jnp.asarray(mask_np, jnp.float32).reshape(-1)))

    out_f_p, aux = fused_forward(xf_p, mcol_p, params, grid, tm)

    out = _unframes(out_f_p[:m, :F].astype(jnp.float32), b, c)[..., :length]
    mark = aux[:m, 0:NCLS].reshape(b, n, NCLS)                          # [B, N, 2]
    clean_mark = aux[:m, NCLS:2 * NCLS].reshape(b, n, NCLS)             # [B, N, 2]
    codes = aux[:m, 2 * NCLS].astype(jnp.int32).reshape(b, 1, n)        # exact: < 16

    assert out.shape[-1] >= 0
    q_res = QuantizedResult(x=out, codes=codes, bandwidth=float(FRAME_RATE))
    return q_res, mark, mark_label, clean_mark, clean_mark_label


# ---------------------------------- main ------------------------------------
if __name__ == "__main__":
    random.seed(0)                       # deterministic masking
    key = jax.random.PRNGKey(0)
    pkey, xkey = jax.random.split(key)
    params = init_params(pkey)
    x = jax.random.normal(xkey, (B, C, T), jnp.float32)   # [2, 1, 20480]

    q_res, mark, mark_label, clean_mark, clean_mark_label = wm_encodec_forward(params, x)

    jax.block_until_ready((q_res.x, q_res.codes, mark, clean_mark))
    assert q_res.x.shape == (B, C, T)
    assert q_res.codes.shape == (B, 1, N)
    assert int(jnp.max(q_res.codes)) < K_BINS and int(jnp.min(q_res.codes)) >= 0
    assert mark.shape == (B, N, NCLS)
    assert clean_mark.shape == (B, N, NCLS)
    assert mark_label.shape == (B, N)
    assert clean_mark_label.shape == (B, N)
    assert bool(jnp.all(jnp.isfinite(q_res.x)))
    print("KERNEL_OK")
</pallas_src>

<mosaic_0001>
module attributes {stable_mosaic.version = 11 : i64} {
  func.func @_fused_kernel(%arg0: i32, %arg1: memref<128x384xbf16, #tpu.memory_space<vmem>>, %arg2: memref<128x1xf32, #tpu.memory_space<vmem>>, %arg3: memref<384x128xbf16, #tpu.memory_space<vmem>>, %arg4: memref<16x64xbf16, #tpu.memory_space<vmem>>, %arg5: memref<64x512xbf16, #tpu.memory_space<vmem>>, %arg6: memref<32x128xbf16, #tpu.memory_space<vmem>>, %arg7: memref<1x512xf32, #tpu.memory_space<vmem>>, %arg8: memref<128x384xbf16, #tpu.memory_space<vmem>>, %arg9: memref<128x128xf32, #tpu.memory_space<vmem>>) attributes {dimension_semantics = [#tpu.dimension_semantics<parallel>], iteration_bounds = array<i64: 1>, scalar_prefetch = 0 : i64, scratch_operands = 0 : i64, tpu.core_type = #tpu.core_type<tc>, window_params = [{transform_indices = @transform_0, window_bounds = array<i64: 128, 384>}, {transform_indices = @transform_1, window_bounds = array<i64: 128, 1>}, {pipeline_mode = #tpu.pipeline_mode<synchronous>, transform_indices = @transform_2, window_bounds = array<i64: 384, 128>}, {pipeline_mode = #tpu.pipeline_mode<synchronous>, transform_indices = @transform_3, window_bounds = array<i64: 16, 64>}, {pipeline_mode = #tpu.pipeline_mode<synchronous>, transform_indices = @transform_4, window_bounds = array<i64: 64, 512>}, {pipeline_mode = #tpu.pipeline_mode<synchronous>, transform_indices = @transform_5, window_bounds = array<i64: 32, 128>}, {pipeline_mode = #tpu.pipeline_mode<synchronous>, transform_indices = @transform_6, window_bounds = array<i64: 1, 512>}, {transform_indices = @transform_7, window_bounds = array<i64: 128, 384>}, {transform_indices = @transform_8, window_bounds = array<i64: 128, 128>}]} {
    %c0 = arith.constant 0 : index
    %c0_0 = arith.constant 0 : index
    %0 = vector.load %arg1[%c0, %c0_0] : memref<128x384xbf16, #tpu.memory_space<vmem>>, vector<128x384xbf16>
    %c0_1 = arith.constant 0 : index
    %c0_2 = arith.constant 0 : index
    %1 = vector.load %arg3[%c0_1, %c0_2] : memref<384x128xbf16, #tpu.memory_space<vmem>>, vector<384x128xbf16>
    %cst = arith.constant dense<0.000000e+00> : vector<128x128xf32>
    %2 = tpu.matmul %0, %1, %cst {dimension_numbers = #tpu.dot_dimension_numbers<[1], [0], [0], [1], [0, 0, 1, 1], [], []>} : vector<128x384xbf16>, vector<384x128xbf16>, vector<128x128xf32> -> vector<128x128xf32>
    %3 = vector.extract_strided_slice %2 {offsets = [0, 0], sizes = [128, 16], strides = [1, 1]} : vector<128x128xf32> to vector<128x16xf32>
    %cst_3 = arith.constant dense<0x7F800000> : vector<128xf32>
    %4 = vector.multi_reduction <minimumf>, %3, %cst_3 [1] : vector<128x16xf32> to vector<128xf32>
    %5 = vector.shape_cast %4 : vector<128xf32> to vector<128x1xf32>
    %6 = tpu.iota {dimensions = array<i32: 1>} : vector<128x16xi32>
    %7 = vector.broadcast %5 : vector<128x1xf32> to vector<128x16xf32>
    %8 = arith.cmpf ole, %3, %7 : vector<128x16xf32>
    %c16_i32 = arith.constant 16 : i32
    %9 = vector.broadcast %c16_i32 : i32 to vector<128x16xi32>
    %10 = arith.select %8, %6, %9 : vector<128x16xi1>, vector<128x16xi32>
    %cst_4 = arith.constant dense<2147483647> : vector<128xi32>
    %11 = vector.multi_reduction <minsi>, %10, %cst_4 [1] : vector<128x16xi32> to vector<128xi32>
    %12 = vector.shape_cast %11 : vector<128xi32> to vector<128x1xi32>
    %c15_i32 = arith.constant 15 : i32
    %13 = vector.broadcast %c15_i32 : i32 to vector<128x1xi32>
    %14 = arith.minsi %12, %13 : vector<128x1xi32>
    %15 = vector.broadcast %14 : vector<128x1xi32> to vector<128x16xi32>
    %16 = arith.cmpi eq, %6, %15 : vector<128x16xi32>
    %17 = arith.extui %16 : vector<128x16xi1> to vector<128x16xi32>
    %18 = arith.sitofp %17 : vector<128x16xi32> to vector<128x16xf32>
    %19 = arith.truncf %18 : vector<128x16xf32> to vector<128x16xbf16>
    %c0_5 = arith.constant 0 : index
    %c0_6 = arith.constant 0 : index
    %20 = vector.load %arg4[%c0_5, %c0_6] : memref<16x64xbf16, #tpu.memory_space<vmem>>, vector<16x64xbf16>
    %cst_7 = arith.constant dense<0.000000e+00> : vector<128x64xf32>
    %21 = tpu.matmul %19, %20, %cst_7 {dimension_numbers = #tpu.dot_dimension_numbers<[1], [0], [0], [1], [0, 0, 1, 1], [], []>} : vector<128x16xbf16>, vector<16x64xbf16>, vector<128x64xf32> -> vector<128x64xf32>
    %c0_8 = arith.constant 0 : index
    %c0_9 = arith.constant 0 : index
    %22 = vector.load %arg2[%c0_8, %c0_9] : memref<128x1xf32, #tpu.memory_space<vmem>>, vector<128x1xf32>
    %23 = vector.extract_strided_slice %2 {offsets = [0, 64], sizes = [128, 64], strides = [1, 1]} : vector<128x128xf32> to vector<128x64xf32>
    %24 = vector.broadcast %22 : vector<128x1xf32> to vector<128x64xf32>
    %25 = arith.mulf %24, %23 : vector<128x64xf32>
    %26 = arith.addf %21, %25 : vector<128x64xf32>
    %cst_10 = arith.constant 0.000000e+00 : f32
    %27 = vector.broadcast %cst_10 : f32 to vector<128x64xf32>
    %28 = arith.maximumf %26, %27 : vector<128x64xf32>
    %29 = vector.extract_strided_slice %2 {offsets = [0, 16], sizes = [128, 32], strides = [1, 1]} : vector<128x128xf32> to vector<128x32xf32>
    %cst_11 = arith.constant 0.000000e+00 : f32
    %30 = vector.broadcast %cst_11 : f32 to vector<128x32xf32>
    %31 = arith.maximumf %29, %30 : vector<128x32xf32>
    %32 = arith.truncf %28 : vector<128x64xf32> to vector<128x64xbf16>
    %c0_12 = arith.constant 0 : index
    %c0_13 = arith.constant 0 : index
    %33 = vector.load %arg5[%c0_12, %c0_13] : memref<64x512xbf16, #tpu.memory_space<vmem>>, vector<64x512xbf16>
    %cst_14 = arith.constant dense<0.000000e+00> : vector<128x512xf32>
    %34 = tpu.matmul %32, %33, %cst_14 {dimension_numbers = #tpu.dot_dimension_numbers<[1], [0], [0], [1], [0, 0, 1, 1], [], []>} : vector<128x64xbf16>, vector<64x512xbf16>, vector<128x512xf32> -> vector<128x512xf32>
    %c0_15 = arith.constant 0 : index
    %c0_16 = arith.constant 0 : index
    %35 = vector.load %arg7[%c0_15, %c0_16] : memref<1x512xf32, #tpu.memory_space<vmem>>, vector<1x512xf32>
    %36 = vector.broadcast %35 : vector<1x512xf32> to vector<128x512xf32>
    %37 = arith.addf %34, %36 : vector<128x512xf32>
    %38 = vector.extract_strided_slice %37 {offsets = [0, 384], sizes = [128, 128], strides = [1, 1]} : vector<128x512xf32> to vector<128x128xf32>
    %39 = arith.truncf %31 : vector<128x32xf32> to vector<128x32xbf16>
    %c0_17 = arith.constant 0 : index
    %c0_18 = arith.constant 0 : index
    %40 = vector.load %arg6[%c0_17, %c0_18] : memref<32x128xbf16, #tpu.memory_space<vmem>>, vector<32x128xbf16>
    %cst_19 = arith.constant dense<0.000000e+00> : vector<128x128xf32>
    %41 = tpu.matmul %39, %40, %cst_19 {dimension_numbers = #tpu.dot_dimension_numbers<[1], [0], [0], [1], [0, 0, 1, 1], [], []>} : vector<128x32xbf16>, vector<32x128xbf16>, vector<128x128xf32> -> vector<128x128xf32>
    %42 = arith.addf %38, %41 : vector<128x128xf32>
    %43 = vector.extract_strided_slice %37 {offsets = [0, 0], sizes = [128, 384], strides = [1, 1]} : vector<128x512xf32> to vector<128x384xf32>
    %44 = arith.truncf %43 : vector<128x384xf32> to vector<128x384xbf16>
    %c0_20 = arith.constant 0 : index
    %c0_21 = arith.constant 0 : index
    %45 = vector.load %arg8[%c0_20, %c0_21] : memref<128x384xbf16, #tpu.memory_space<vmem>>, vector<128x384xbf16>
    tpu.vector_store %arg8[%c0_20, %c0_21], %44 {strides = array<i32>} : memref<128x384xbf16, #tpu.memory_space<vmem>>, vector<128x384xbf16>,
    %46 = tpu.iota {dimensions = array<i32: 1>} : vector<128x128xi32>
    %c4_i32 = arith.constant 4 : i32
    %47 = vector.broadcast %c4_i32 : i32 to vector<128x128xi32>
    %48 = arith.cmpi eq, %46, %47 : vector<128x128xi32>
    %49 = arith.sitofp %14 : vector<128x1xi32> to vector<128x1xf32>
    %50 = vector.shape_cast %49 : vector<128x1xf32> to vector<128x1xf32>
    %51 = vector.broadcast %50 : vector<128x1xf32> to vector<128x128xf32>
    %52 = arith.select %48, %51, %42 : vector<128x128xi1>, vector<128x128xf32>
    %c0_22 = arith.constant 0 : index
    %c0_23 = arith.constant 0 : index
    %53 = vector.load %arg9[%c0_22, %c0_23] : memref<128x128xf32, #tpu.memory_space<vmem>>, vector<128x128xf32>
    tpu.vector_store %arg9[%c0_22, %c0_23], %52 {strides = array<i32>} : memref<128x128xf32, #tpu.memory_space<vmem>>, vector<128x128xf32>,
    return
  }
  func.func @transform_0(%arg0: i32) -> (i32, i32) {
    %c0_i32 = arith.constant 0 : i32
    %c0_i32_0 = arith.constant 0 : i32
    return %arg0, %c0_i32 : i32, i32
  }
  func.func @transform_1(%arg0: i32) -> (i32, i32) {
    %c0_i32 = arith.constant 0 : i32
    %c0_i32_0 = arith.constant 0 : i32
    return %arg0, %c0_i32 : i32, i32
  }
  func.func @transform_2(%arg0: i32) -> (i32, i32) {
    %c0_i32 = arith.constant 0 : i32
    %c0_i32_0 = arith.constant 0 : i32
    %c0_i32_1 = arith.constant 0 : i32
    return %c0_i32, %c0_i32_0 : i32, i32
  }
  func.func @transform_3(%arg0: i32) -> (i32, i32) {
    %c0_i32 = arith.constant 0 : i32
    %c0_i32_0 = arith.constant 0 : i32
    %c0_i32_1 = arith.constant 0 : i32
    return %c0_i32, %c0_i32_0 : i32, i32
  }
  func.func @transform_4(%arg0: i32) -> (i32, i32) {
    %c0_i32 = arith.constant 0 : i32
    %c0_i32_0 = arith.constant 0 : i32
    %c0_i32_1 = arith.constant 0 : i32
    return %c0_i32, %c0_i32_0 : i32, i32
  }
  func.func @transform_5(%arg0: i32) -> (i32, i32) {
    %c0_i32 = arith.constant 0 : i32
    %c0_i32_0 = arith.constant 0 : i32
    %c0_i32_1 = arith.constant 0 : i32
    return %c0_i32, %c0_i32_0 : i32, i32
  }
  func.func @transform_6(%arg0: i32) -> (i32, i32) {
    %c0_i32 = arith.constant 0 : i32
    %c0_i32_0 = arith.constant 0 : i32
    %c0_i32_1 = arith.constant 0 : i32
    return %c0_i32, %c0_i32_0 : i32, i32
  }
  func.func @transform_7(%arg0: i32) -> (i32, i32) {
    %c0_i32 = arith.constant 0 : i32
    %c0_i32_0 = arith.constant 0 : i32
    return %arg0, %c0_i32 : i32, i32
  }
  func.func @transform_8(%arg0: i32) -> (i32, i32) {
    %c0_i32 = arith.constant 0 : i32
    %c0_i32_0 = arith.constant 0 : i32
    return %arg0, %c0_i32 : i32, i32
  }
}

</mosaic_0001>

<llo_original>
// kernel: tpu_custom_call.1
$region0: #{tpu_custom_call.1}
  #allocation0 [shape = 'u32[]', space=smem, size = 0x4, offset = 0x4, fixed_abs, tag = 'smem constant byte address 0x4 - core index']
  #allocation1 [shape = 'u32[144,128]{1,0:T(1,128)}', space=vmem, size = 0x12000, scoped, tag = 'internal scratch']
  %s0 = inlined_call_operand.hbm [shape: bf16[128,384], index: 0, kind: input, shape index: {}]
  %s1 = inlined_call_operand.vmem [shape: f32[128,1], index: 1, kind: input, shape index: {}]
  %s2 = inlined_call_operand.hbm [shape: bf16[384,128], index: 2, kind: input, shape index: {}]
  %s3 = inlined_call_operand.hbm [shape: bf16[16,64], index: 3, kind: input, shape index: {}]
  %s4 = inlined_call_operand.vmem [shape: bf16[64,512], index: 4, kind: input, shape index: {}]
  %s5 = inlined_call_operand.vmem [shape: bf16[32,128], index: 5, kind: input, shape index: {}]
  %s6 = inlined_call_operand.vmem [shape: f32[1,512], index: 6, kind: input, shape index: {}]
  %s7 = inlined_call_operand.hbm [shape: bf16[128,384], index: 7, kind: output, shape index: {0}]
  %s8 = inlined_call_operand.hbm [shape: f32[128,128], index: 8, kind: output, shape index: {1}]
  %9 = xla_tuple %s7, %s8
  %s10 = sld [smem:[#allocation0]]
  $region58: #{tpu_custom_call.1} parent=0
    _
  %s12 = ssub.s32 1, %s10
  %s13 = scalar_select 0, %s12, %s10
  $region1: #{tpu_custom_call.1} parent=0
    #allocation2 [shape = 'u8[98304]{0}', space=vmem, size = 0x18000, scoped, tag = 'input window, operand 0, single buffered']
    #allocation3 [shape = 's32[1]{0}', space=sflag, size = 0x4, scoped, tag = 'scoped memory for tpu_custom_call.1']
    #allocation4 [shape = 's32[1]{0}', space=sflag, size = 0x4, scoped, tag = 'scoped memory for tpu_custom_call.1']
    #allocation5 [shape = 'u8[98304]{0}', space=vmem, size = 0x18000, scoped, tag = 'input window, operand 2, single buffered']
    #allocation6 [shape = 's32[1]{0}', space=sflag, size = 0x4, scoped, tag = 'scoped memory for tpu_custom_call.1']
    #allocation7 [shape = 'u8[4096]{0}', space=vmem, size = 0x1000, scoped, tag = 'input window, operand 3, single buffered']
    #allocation8 [shape = 'u8[98304]{0}', space=vmem, size = 0x18000, scoped, tag = 'output window, operand 0, single buffered']
    #allocation9 [shape = 'u8[65536]{0}', space=vmem, size = 0x10000, scoped, tag = 'output window, operand 1, single buffered']
    #allocation10 [shape = 's32[1]{0}', space=sflag, size = 0x4, scoped, tag = 'scoped memory for tpu_custom_call.1']
    %14 = vsyncpa [#allocation3], 0
    %15 = vsyncpa [#allocation6], 0
    %16 = vsyncpa [#allocation4], 0
    %17 = vsyncpa [#allocation10], 0
    // Predicated region
    $region2: #{tpu_custom_call.1} parent=1 // pred_check
      _
    $region3: #{tpu_custom_call.1} parent=1 // pred_check_branch
      %19 = sbr.rel (0) target = $region5
    $region4: #{tpu_custom_call.1} parent=1 // pred_region
      %s21 = ssub.s32 3072, 3072
      %22 = vsyncadd [#allocation3], %s21
      %s23 = sshll.u32 [#allocation2], 4
      %s24 = int_to_ptr.vmem [resolvable:$true] %s23
      %29 = dma.hbm_to_vmem [thread:$0]  %s0, 3072, %s24, [#allocation3], 192, 192, 12
    $region5: #{tpu_custom_call.1} parent=1 // pred_fallthru
      _
    // Predicated region
    $region6: #{tpu_custom_call.1} parent=1 // pred_check
      _
    $region7: #{tpu_custom_call.1} parent=1 // pred_check_branch
      %31 = sbr.rel (0) target = $region9
    $region8: #{tpu_custom_call.1} parent=1 // pred_region
      _
    $region9: #{tpu_custom_call.1} parent=1 // pred_fallthru
      _
    // Predicated region
    $region10: #{tpu_custom_call.1} parent=1 // pred_check
      _
    $region11: #{tpu_custom_call.1} parent=1 // pred_check_branch
      %33 = sbr.rel (0) target = $region13
    $region12: #{tpu_custom_call.1} parent=1 // pred_region
      %s35 = ssub.s32 3072, 3072
      %36 = vsyncadd [#allocation6], %s35
      %s37 = sshll.u32 [#allocation5], 4
      %s38 = int_to_ptr.vmem [resolvable:$true] %s37
      %43 = dma.hbm_to_vmem [thread:$0]  %s2, 3072, %s38, [#allocation6], 64, 64, 4
    $region13: #{tpu_custom_call.1} parent=1 // pred_fallthru
      _
    // Predicated region
    $region14: #{tpu_custom_call.1} parent=1 // pred_check
      _
    $region15: #{tpu_custom_call.1} parent=1 // pred_check_branch
      %45 = sbr.rel (0) target = $region17
    $region16: #{tpu_custom_call.1} parent=1 // pred_region
      %s47 = ssub.s32 128, 128
      %48 = vsyncadd [#allocation6], %s47
      %s49 = sshll.u32 [#allocation7], 4
      %s50 = int_to_ptr.vmem [resolvable:$true] %s49
      %55 = dma.hbm_to_vmem [thread:$0]  %s3, 128, %s50, [#allocation6], 64, 64, 4
    $region17: #{tpu_custom_call.1} parent=1 // pred_fallthru
      _
    // Predicated region
    $region18: #{tpu_custom_call.1} parent=1 // pred_check
      _
    $region19: #{tpu_custom_call.1} parent=1 // pred_check_branch
      %57 = sbr.rel (0) target = $region21
    $region20: #{tpu_custom_call.1} parent=1 // pred_region
      _
    $region21: #{tpu_custom_call.1} parent=1 // pred_fallthru
      _
    // Predicated region
    $region22: #{tpu_custom_call.1} parent=1 // pred_check
      _
    $region23: #{tpu_custom_call.1} parent=1 // pred_check_branch
      %59 = sbr.rel (0) target = $region25
    $region24: #{tpu_custom_call.1} parent=1 // pred_region
      _
    $region25: #{tpu_custom_call.1} parent=1 // pred_fallthru
      _
    // Predicated region
    $region26: #{tpu_custom_call.1} parent=1 // pred_check
      _
    $region27: #{tpu_custom_call.1} parent=1 // pred_check_branch
      %61 = sbr.rel (0) target = $region29
    $region28: #{tpu_custom_call.1} parent=1 // pred_region
      _
    $region29: #{tpu_custom_call.1} parent=1 // pred_fallthru
      _
    // Predicated region
    $region30: #{tpu_custom_call.1} parent=1 // pred_check
      _
    $region31: #{tpu_custom_call.1} parent=1 // pred_check_branch
      %63 = sbr.rel (0) target = $region33
    $region32: #{tpu_custom_call.1} parent=1 // pred_region
      %64 = dma.done [#allocation3], 3072
    $region33: #{tpu_custom_call.1} parent=1 // pred_fallthru
      _
    // Predicated region
    $region34: #{tpu_custom_call.1} parent=1 // pred_check
      _
    $region35: #{tpu_custom_call.1} parent=1 // pred_check_branch
      %66 = sbr.rel (0) target = $region37
    $region36: #{tpu_custom_call.1} parent=1 // pred_region
      %67 = dma.done [#allocation6], 3072
    $region37: #{tpu_custom_call.1} parent=1 // pred_fallthru
      _
    // Predicated region
    $region38: #{tpu_custom_call.1} parent=1 // pred_check
      _
    $region39: #{tpu_custom_call.1} parent=1 // pred_check_branch
      %69 = sbr.rel (0) target = $region41
    $region40: #{tpu_custom_call.1} parent=1 // pred_region
      %70 = dma.done [#allocation6], 128
    $region41: #{tpu_custom_call.1} parent=1 // pred_fallthru
      _
    %v72 = vld [vmem:[#allocation2] sm:$0xff]
    %v73 = vld [vmem:[#allocation2 + $0x8] sm:$0xf]
    %v74 = vld [vmem:[#allocation2 + $0xc] sm:$0xff]
    %v75 = vld [vmem:[#allocation2 + $0x14] sm:$0xf]
    %v76 = vld [vmem:[#allocation2 + $0x18] sm:$0xff]
    %v77 = vld [vmem:[#allocation2 + $0x20] sm:$0xf]
    %v78 = vld [vmem:[#allocation2 + $0x24] sm:$0xff]
    %v79 = vld [vmem:[#allocation2 + $0x2c] sm:$0xf]
    %v80 = vld [vmem:[#allocation2 + $0x30] sm:$0xff]
    %v81 = vld [vmem:[#allocation2 + $0x38] sm:$0xf]
    %v82 = vld [vmem:[#allocation2 + $0x3c] sm:$0xff]
    %v83 = vld [vmem:[#allocation2 + $0x44] sm:$0xf]
    %v84 = vld [vmem:[#allocation2 + $0x48] sm:$0xff]
    %v85 = vld [vmem:[#allocation2 + $0x50] sm:$0xf]
    %v86 = vld [vmem:[#allocation2 + $0x54] sm:$0xff]
    %v87 = vld [vmem:[#allocation2 + $0x5c] sm:$0xf]
    %v88 = vld [vmem:[#allocation2 + $0x60] sm:$0xff]
    %v89 = vld [vmem:[#allocation2 + $0x68] sm:$0xf]
    %v90 = vld [vmem:[#allocation2 + $0x6c] sm:$0xff]
    %v91 = vld [vmem:[#allocation2 + $0x74] sm:$0xf]
    %v92 = vld [vmem:[#allocation2 + $0x78] sm:$0xff]
    %v93 = vld [vmem:[#allocation2 + $0x80] sm:$0xf]
    %v94 = vld [vmem:[#allocation2 + $0x84] sm:$0xff]
    %v95 = vld [vmem:[#allocation2 + $0x8c] sm:$0xf]
    %v96 = vld [vmem:[#allocation2 + $0x90] sm:$0xff]
    %v97 = vld [vmem:[#allocation2 + $0x98] sm:$0xf]
    %v98 = vld [vmem:[#allocation2 + $0x9c] sm:$0xff]
    %v99 = vld [vmem:[#allocation2 + $0xa4] sm:$0xf]
    %v100 = vld [vmem:[#allocation2 + $0xa8] sm:$0xff]
    %v101 = vld [vmem:[#allocation2 + $0xb0] sm:$0xf]
    %v102 = vld [vmem:[#allocation2 + $0xb4] sm:$0xff]
    %v103 = vld [vmem:[#allocation2 + $0xbc] sm:$0xf]
    %v104 = vld [vmem:[#allocation5] sm:$0xf]
    %v105 = vld [vmem:[#allocation5 + $0x4] sm:$0xf]
    %v106 = vld [vmem:[#allocation5 + $0x8] sm:$0xf]
    %v107 = vld [vmem:[#allocation5 + $0xc] sm:$0xf]
    %v108 = vld [vmem:[#allocation5 + $0x10] sm:$0xf]
    %v109 = vld [vmem:[#allocation5 + $0x14] sm:$0xf]
    %v110 = vld [vmem:[#allocation5 + $0x18] sm:$0xf]
    %v111 = vld [vmem:[#allocation5 + $0x1c] sm:$0xf]
    %v112 = vld [vmem:[#allocation5 + $0x20] sm:$0xf]
    %v113 = vld [vmem:[#allocation5 + $0x24] sm:$0xf]
    %v114 = vld [vmem:[#allocation5 + $0x28] sm:$0xf]
    %v115 = vld [vmem:[#allocation5 + $0x2c] sm:$0xf]
    %v116 = vld [vmem:[#allocation5 + $0x30] sm:$0xf]
    %v117 = vld [vmem:[#allocation5 + $0x34] sm:$0xf]
    %v118 = vld [vmem:[#allocation5 + $0x38] sm:$0xf]
    %v119 = vld [vmem:[#allocation5 + $0x3c] sm:$0xf]
    %v120 = vld [vmem:[#allocation5 + $0x40] sm:$0xf]
    %v121 = vld [vmem:[#allocation5 + $0x44] sm:$0xf]
    %v122 = vld [vmem:[#allocation5 + $0x48] sm:$0xf]
    %v123 = vld [vmem:[#allocation5 + $0x4c] sm:$0xf]
    %v124 = vld [vmem:[#allocation5 + $0x50] sm:$0xf]
    %v125 = vld [vmem:[#allocation5 + $0x54] sm:$0xf]
    %v126 = vld [vmem:[#allocation5 + $0x58] sm:$0xf]
    %v127 = vld [vmem:[#allocation5 + $0x5c] sm:$0xf]
    %v128 = vld [vmem:[#allocation5 + $0x60] sm:$0xf]
    %v129 = vld [vmem:[#allocation5 + $0x64] sm:$0xf]
    %v130 = vld [vmem:[#allocation5 + $0x68] sm:$0xf]
    %v131 = vld [vmem:[#allocation5 + $0x6c] sm:$0xf]
    %v132 = vld [vmem:[#allocation5 + $0x70] sm:$0xf]
    %v133 = vld [vmem:[#allocation5 + $0x74] sm:$0xf]
    %v134 = vld [vmem:[#allocation5 + $0x78] sm:$0xf]
    %v135 = vld [vmem:[#allocation5 + $0x7c] sm:$0xf]
    %v136 = vld [vmem:[#allocation5 + $0x80] sm:$0xf]
    %v137 = vld [vmem:[#allocation5 + $0x84] sm:$0xf]
    %v138 = vld [vmem:[#allocation5 + $0x88] sm:$0xf]
    %v139 = vld [vmem:[#allocation5 + $0x8c] sm:$0xf]
    %v140 = vld [vmem:[#allocation5 + $0x90] sm:$0xf]
    %v141 = vld [vmem:[#allocation5 + $0x94] sm:$0xf]
    %v142 = vld [vmem:[#allocation5 + $0x98] sm:$0xf]
    %v143 = vld [vmem:[#allocation5 + $0x9c] sm:$0xf]
    %v144 = vld [vmem:[#allocation5 + $0xa0] sm:$0xf]
    %v145 = vld [vmem:[#allocation5 + $0xa4] sm:$0xf]
    %v146 = vld [vmem:[#allocation5 + $0xa8] sm:$0xf]
    %v147 = vld [vmem:[#allocation5 + $0xac] sm:$0xf]
    %v148 = vld [vmem:[#allocation5 + $0xb0] sm:$0xf]
    %v149 = vld [vmem:[#allocation5 + $0xb4] sm:$0xf]
    %v150 = vld [vmem:[#allocation5 + $0xb8] sm:$0xf]
    %v151 = vld [vmem:[#allocation5 + $0xbc] sm:$0xf]
    %v184 = vunpack.c.l.b16 %v72
    %v185 = vunpack.c.h.b16 %v72
    %v186 = vunpack.c.l.b16 %v73
    %v187 = vunpack.c.l.b16 %v74
    %v188 = vunpack.c.h.b16 %v74
    %v189 = vunpack.c.l.b16 %v75
    %v190 = vunpack.c.l.b16 %v76
    %v191 = vunpack.c.h.b16 %v76
    %v192 = vunpack.c.l.b16 %v77
    %v193 = vunpack.c.l.b16 %v78
    %v194 = vunpack.c.h.b16 %v78
    %v195 = vunpack.c.l.b16 %v79
    %v196 = vunpack.c.l.b16 %v80
    %v197 = vunpack.c.h.b16 %v80
    %v198 = vunpack.c.l.b16 %v81
    %v199 = vunpack.c.l.b16 %v82
    %v200 = vunpack.c.h.b16 %v82
    %v201 = vunpack.c.l.b16 %v83
    %v202 = vunpack.c.l.b16 %v84
    %v203 = vunpack.c.h.b16 %v84
    %v204 = vunpack.c.l.b16 %v85
    %v205 = vunpack.c.l.b16 %v86
    %v206 = vunpack.c.h.b16 %v86
    %v207 = vunpack.c.l.b16 %v87
    %v208 = vunpack.c.l.b16 %v88
    %v209 = vunpack.c.h.b16 %v88
    %v210 = vunpack.c.l.b16 %v89
    %v211 = vunpack.c.l.b16 %v90
    %v212 = vunpack.c.h.b16 %v90
    %v213 = vunpack.c.l.b16 %v91
    %v214 = vunpack.c.l.b16 %v92
    %v215 = vunpack.c.h.b16 %v92
    %v216 = vunpack.c.l.b16 %v93
    %v217 = vunpack.c.l.b16 %v94
    %v218 = vunpack.c.h.b16 %v94
    %v219 = vunpack.c.l.b16 %v95
    %v220 = vunpack.c.l.b16 %v96
    %v221 = vunpack.c.h.b16 %v96
    %v222 = vunpack.c.l.b16 %v97
    %v223 = vunpack.c.l.b16 %v98
    %v224 = vunpack.c.h.b16 %v98
    %v225 = vunpack.c.l.b16 %v99
    %v226 = vunpack.c.l.b16 %v100
    %v227 = vunpack.c.h.b16 %v100
    %v228 = vunpack.c.l.b16 %v101
    %v229 = vunpack.c.l.b16 %v102
    %v230 = vunpack.c.h.b16 %v102
    %v231 = vunpack.c.l.b16 %v103
    %v232 = vpack.c.b16 %v187, %v184
    %v233 = vpack.c.b16 %v188, %v185
    %v234 = vpack.c.b16 %v189, %v186
    %v235 = vpack.c.b16 %v193, %v190
    %v236 = vpack.c.b16 %v194, %v191
    %v237 = vpack.c.b16 %v195, %v192
    %v238 = vpack.c.b16 %v199, %v196
    %v239 = vpack.c.b16 %v200, %v197
    %v240 = vpack.c.b16 %v201, %v198
    %v241 = vpack.c.b16 %v205, %v202
    %v242 = vpack.c.b16 %v206, %v203
    %v243 = vpack.c.b16 %v207, %v204
    %v244 = vpack.c.b16 %v211, %v208
    %v245 = vpack.c.b16 %v212, %v209
    %v246 = vpack.c.b16 %v213, %v210
    %v247 = vpack.c.b16 %v217, %v214
    %v248 = vpack.c.b16 %v218, %v215
    %v249 = vpack.c.b16 %v219, %v216
    %v250 = vpack.c.b16 %v223, %v220
    %v251 = vpack.c.b16 %v224, %v221
    %v252 = vpack.c.b16 %v225, %v222
    %v253 = vpack.c.b16 %v229, %v226
    %v254 = vpack.c.b16 %v230, %v227
    %v255 = vpack.c.b16 %v231, %v228
    %v328 = vunpack.c.l.b16 %v104
    %v329 = vunpack.c.l.b16 %v105
    %v330 = vunpack.c.l.b16 %v106
    %v331 = vunpack.c.l.b16 %v107
    %v332 = vunpack.c.l.b16 %v108
    %v333 = vunpack.c.l.b16 %v109
    %v334 = vunpack.c.l.b16 %v110
    %v335 = vunpack.c.l.b16 %v111
    %v336 = vunpack.c.l.b16 %v112
    %v337 = vunpack.c.l.b16 %v113
    %v338 = vunpack.c.l.b16 %v114
    %v339 = vunpack.c.l.b16 %v115
    %v340 = vunpack.c.l.b16 %v116
    %v341 = vunpack.c.l.b16 %v117
    %v342 = vunpack.c.l.b16 %v118
    %v343 = vunpack.c.l.b16 %v119
    %v344 = vunpack.c.l.b16 %v120
    %v345 = vunpack.c.l.b16 %v121
    %v346 = vunpack.c.l.b16 %v122
    %v347 = vunpack.c.l.b16 %v123
    %v348 = vunpack.c.l.b16 %v124
    %v349 = vunpack.c.l.b16 %v125
    %v350 = vunpack.c.l.b16 %v126
    %v351 = vunpack.c.l.b16 %v127
    %v352 = vunpack.c.l.b16 %v128
    %v353 = vunpack.c.l.b16 %v129
    %v354 = vunpack.c.l.b16 %v130
    %v355 = vunpack.c.l.b16 %v131
    %v356 = vunpack.c.l.b16 %v132
    %v357 = vunpack.c.l.b16 %v133
    %v358 = vunpack.c.l.b16 %v134
    %v359 = vunpack.c.l.b16 %v135
    %v360 = vunpack.c.l.b16 %v136
    %v361 = vunpack.c.l.b16 %v137
    %v362 = vunpack.c.l.b16 %v138
    %v363 = vunpack.c.l.b16 %v139
    %v364 = vunpack.c.l.b16 %v140
    %v365 = vunpack.c.l.b16 %v141
    %v366 = vunpack.c.l.b16 %v142
    %v367 = vunpack.c.l.b16 %v143
    %v368 = vunpack.c.l.b16 %v144
    %v369 = vunpack.c.l.b16 %v145
    %v370 = vunpack.c.l.b16 %v146
    %v371 = vunpack.c.l.b16 %v147
    %v372 = vunpack.c.l.b16 %v148
    %v373 = vunpack.c.l.b16 %v149
    %v374 = vunpack.c.l.b16 %v150
    %v375 = vunpack.c.l.b16 %v151
    %v376 = vpack.c.b16 %v329, %v328
    %v377 = vpack.c.b16 %v331, %v330
    %v378 = vpack.c.b16 %v333, %v332
    %v379 = vpack.c.b16 %v335, %v334
    %v380 = vpack.c.b16 %v337, %v336
    %v381 = vpack.c.b16 %v339, %v338
    %v382 = vpack.c.b16 %v341, %v340
    %v383 = vpack.c.b16 %v343, %v342
    %v384 = vpack.c.b16 %v345, %v344
    %v385 = vpack.c.b16 %v347, %v346
    %v386 = vpack.c.b16 %v349, %v348
    %v387 = vpack.c.b16 %v351, %v350
    %v388 = vpack.c.b16 %v353, %v352
    %v389 = vpack.c.b16 %v355, %v354
    %v390 = vpack.c.b16 %v357, %v356
    %v391 = vpack.c.b16 %v359, %v358
    %v392 = vpack.c.b16 %v361, %v360
    %v393 = vpack.c.b16 %v363, %v362
    %v394 = vpack.c.b16 %v365, %v364
    %v395 = vpack.c.b16 %v367, %v366
    %v396 = vpack.c.b16 %v369, %v368
    %v397 = vpack.c.b16 %v371, %v370
    %v398 = vpack.c.b16 %v373, %v372
    %v399 = vpack.c.b16 %v375, %v374
    %424 = vmatprep.subr.bf16.mxu0 0
    %425 = vmatpush1.bf16.msra.mxu0 %v376
    %426 = vmatprep.subr.bf16.mxu0 0
    %427 = vmatpush1.bf16.msra.mxu0 %v377
    %428 = vmatprep.subr.bf16.mxu0 0
    %429 = vmatpush1.bf16.msra.mxu0 %v378
    %430 = vmatprep.subr.bf16.mxu0 0
    %431 = vmatpush1.bf16.msra.mxu0 %v379
    %432 = vmatprep.subr.bf16.mxu0 0
    %433 = vmatpush1.bf16.msra.mxu0 %v380
    %434 = vmatprep.subr.bf16.mxu0 0
    %435 = vmatpush1.bf16.msra.mxu0 %v381
    %436 = vmatprep.subr.bf16.mxu0 0
    %437 = vmatpush1.bf16.msra.mxu0 %v382
    %438 = vmatprep.subr.bf16.mxu0 0
    %439 = vmatpush1.bf16.msra.mxu0 %v383
    %440 = vmatprep.subr.bf16.mxu0 0
    %441 = vmatpush1.bf16.msra.mxu0 %v384
    %442 = vmatprep.subr.bf16.mxu0 0
    %443 = vmatpush1.bf16.msra.mxu0 %v385
    %444 = vmatprep.subr.bf16.mxu0 0
    %445 = vmatpush1.bf16.msra.mxu0 %v386
    %446 = vmatprep.subr.bf16.mxu0 0
    %447 = vmatpush1.bf16.msra.mxu0 %v387
    %448 = vmatprep.subr.bf16.mxu0 0
    %449 = vmatpush1.bf16.msra.mxu0 %v388
    %450 = vmatprep.subr.bf16.mxu0 0
    %451 = vmatpush1.bf16.msra.mxu0 %v389
    %452 = vmatprep.subr.bf16.mxu0 0
    %453 = vmatpush1.bf16.msra.mxu0 %v390
    %454 = vmatprep.subr.bf16.mxu0 0
    %455 = vmatpush1.bf16.msra.mxu0 %v391
    %456 = vmatprep.mubr.bf16.mxu0 %v233
    %457 = vmatmul.mubr.bf16.gmra.mrb[0].mxu0 %v232
    %v458 = vpop.f32.mrb[0].mxu0
    %v459 = vadd.f32 0.0, %v458
    %v460 = vpop.f32.mrb[0].mxu0
    %v461 = vpop.f32.mrb[0].mxu0
    %v462 = vadd.f32 0.0, %v461
    %v463 = vpop.f32.mrb[0].mxu0
    %464 = vmatprep.mubr.bf16.mxu0 %v236
    %465 = vmatmul.mubr.bf16.gmra.mrb[0].mxu0 %v235
    %v466 = vpop.f32.mrb[0].mxu0
    %v467 = vadd.f32 0.0, %v466
    %v468 = vpop.f32.mrb[0].mxu0
    %v469 = vpop.f32.mrb[0].mxu0
    %v470 = vadd.f32 0.0, %v469
    %v471 = vpop.f32.mrb[0].mxu0
    %472 = vmatprep.mubr.bf16.mxu0 %v239
    %473 = vmatmul.mubr.bf16.gmra.mrb[0].mxu0 %v238
    %v474 = vpop.f32.mrb[0].mxu0
    %v475 = vadd.f32 0.0, %v474
    %v476 = vpop.f32.mrb[0].mxu0
    %v477 = vpop.f32.mrb[0].mxu0
    %v478 = vadd.f32 0.0, %v477
    %v479 = vpop.f32.mrb[0].mxu0
    %480 = vmatprep.mubr.bf16.mxu0 %v242
    %481 = vmatmul.mubr.bf16.gmra.mrb[0].mxu0 %v241
    %v482 = vpop.f32.mrb[0].mxu0
    %v483 = vadd.f32 0.0, %v482
    %v484 = vpop.f32.mrb[0].mxu0
    %v485 = vpop.f32.mrb[0].mxu0
    %v486 = vadd.f32 0.0, %v485
    %v487 = vpop.f32.mrb[0].mxu0
    %488 = vmatprep.mubr.bf16.mxu0 %v245
    %489 = vmatmul.mubr.bf16.gmra.mrb[0].mxu0 %v244
    %v490 = vpop.f32.mrb[0].mxu0
    %v491 = vadd.f32 0.0, %v490
    %v492 = vpop.f32.mrb[0].mxu0
    %v493 = vpop.f32.mrb[0].mxu0
    %v494 = vadd.f32 0.0, %v493
    %v495 = vpop.f32.mrb[0].mxu0
    %496 = vmatprep.mubr.bf16.mxu0 %v248
    %497 = vmatmul.mubr.bf16.gmra.mrb[0].mxu0 %v247
    %v498 = vpop.f32.mrb[0].mxu0
    %v499 = vadd.f32 0.0, %v498
    %v500 = vpop.f32.mrb[0].mxu0
    %v501 = vpop.f32.mrb[0].mxu0
    %v502 = vadd.f32 0.0, %v501
    %v503 = vpop.f32.mrb[0].mxu0
    %504 = vmatprep.mubr.bf16.mxu0 %v251
    %505 = vmatmul.mubr.bf16.gmra.mrb[0].mxu0 %v250
    %v506 = vpop.f32.mrb[0].mxu0
    %v507 = vadd.f32 0.0, %v506
    %v508 = vpop.f32.mrb[0].mxu0
    %v509 = vpop.f32.mrb[0].mxu0
    %v510 = vadd.f32 0.0, %v509
    %v511 = vpop.f32.mrb[0].mxu0
    %512 = vmatprep.mubr.bf16.mxu0 %v254
    %513 = vmatmul.mubr.bf16.gmra.mrb[0].mxu0 %v253
    %v514 = vpop.f32.mrb[0].mxu0
    %v515 = vadd.f32 0.0, %v514
    %v516 = vpop.f32.mrb[0].mxu0
    %v517 = vpop.f32.mrb[0].mxu0
    %v518 = vadd.f32 0.0, %v517
    %v519 = vpop.f32.mrb[0].mxu0
    %520 = vdwg.mxu0
    %521 = vmatprep.subr.bf16.mxu0 0
    %522 = vmatpush1.bf16.msra.mxu0 %v392
    %523 = vmatprep.subr.bf16.mxu0 0
    %524 = vmatpush1.bf16.msra.mxu0 %v393
    %525 = vmatprep.subr.bf16.mxu0 0
    %526 = vmatpush1.bf16.msra.mxu0 %v394
    %527 = vmatprep.subr.bf16.mxu0 0
    %528 = vmatpush1.bf16.msra.mxu0 %v395
    %529 = vmatprep.subr.bf16.mxu0 0
    %530 = vmatpush1.bf16.msra.mxu0 %v396
    %531 = vmatprep.subr.bf16.mxu0 0
    %532 = vmatpush1.bf16.msra.mxu0 %v397
    %533 = vmatprep.subr.bf16.mxu0 0
    %534 = vmatpush1.bf16.msra.mxu0 %v398
    %535 = vmatprep.subr.bf16.mxu0 0
    %536 = vmatpush1.bf16.msra.mxu0 %v399
    %537 = vmatprep.subr.bf16.mxu0 0
    %538 = vmatpush1.bf16.msra.mxu0 0
    %539 = vmatprep.subr.bf16.mxu0 0
    %540 = vmatpush1.bf16.msra.mxu0 0
    %541 = vmatprep.subr.bf16.mxu0 0
    %542 = vmatpush1.bf16.msra.mxu0 0
    %543 = vmatprep.subr.bf16.mxu0 0
    %544 = vmatpush1.bf16.msra.mxu0 0
    %545 = vmatprep.subr.bf16.mxu0 0
    %546 = vmatpush1.bf16.msra.mxu0 0
    %547 = vmatprep.subr.bf16.mxu0 0
    %548 = vmatpush1.bf16.msra.mxu0 0
    %549 = vmatprep.subr.bf16.mxu0 0
    %550 = vmatpush1.bf16.msra.mxu0 0
    %551 = vmatprep.subr.bf16.mxu0 0
    %552 = vmatpush1.bf16.msra.mxu0 0
    %553 = vmatprep.mubr.bf16.mxu0 0
    %554 = vmatmul.mubr.bf16.gmra.mrb[0].mxu0 %v234
    %v555 = vpop.f32.mrb[0].mxu0
    %v556 = vadd.f32 %v459, %v555
    %v557 = vpop.f32.mrb[0].mxu0
    %v558 = vpop.f32.mrb[0].mxu0
    %v559 = vadd.f32 %v462, %v558
    %v560 = vpop.f32.mrb[0].mxu0
    %561 = vmatprep.mubr.bf16.mxu0 0
    %562 = vmatmul.mubr.bf16.gmra.mrb[0].mxu0 %v237
    %v563 = vpop.f32.mrb[0].mxu0
    %v564 = vadd.f32 %v467, %v563
    %v565 = vpop.f32.mrb[0].mxu0
    %v566 = vpop.f32.mrb[0].mxu0
    %v567 = vadd.f32 %v470, %v566
    %v568 = vpop.f32.mrb[0].mxu0
    %569 = vmatprep.mubr.bf16.mxu0 0
    %570 = vmatmul.mubr.bf16.gmra.mrb[0].mxu0 %v240
    %v571 = vpop.f32.mrb[0].mxu0
    %v572 = vadd.f32 %v475, %v571
    %v573 = vpop.f32.mrb[0].mxu0
    %v574 = vpop.f32.mrb[0].mxu0
    %v575 = vadd.f32 %v478, %v574
    %v576 = vpop.f32.mrb[0].mxu0
    %577 = vmatprep.mubr.bf16.mxu0 0
    %578 = vmatmul.mubr.bf16.gmra.mrb[0].mxu0 %v243
    %v579 = vpop.f32.mrb[0].mxu0
    %v580 = vadd.f32 %v483, %v579
    %v581 = vpop.f32.mrb[0].mxu0
    %v582 = vpop.f32.mrb[0].mxu0
    %v583 = vadd.f32 %v486, %v582
    %v584 = vpop.f32.mrb[0].mxu0
    %585 = vmatprep.mubr.bf16.mxu0 0
    %586 = vmatmul.mubr.bf16.gmra.mrb[0].mxu0 %v246
    %v587 = vpop.f32.mrb[0].mxu0
    %v588 = vadd.f32 %v491, %v587
    %v589 = vpop.f32.mrb[0].mxu0
    %v590 = vpop.f32.mrb[0].mxu0
    %v591 = vadd.f32 %v494, %v590
    %v592 = vpop.f32.mrb[0].mxu0
    %593 = vmatprep.mubr.bf16.mxu0 0
    %594 = vmatmul.mubr.bf16.gmra.mrb[0].mxu0 %v249
    %v595 = vpop.f32.mrb[0].mxu0
    %v596 = vadd.f32 %v499, %v595
    %v597 = vpop.f32.mrb[0].mxu0
    %v598 = vpop.f32.mrb[0].mxu0
    %v599 = vadd.f32 %v502, %v598
    %v600 = vpop.f32.mrb[0].mxu0
    %601 = vmatprep.mubr.bf16.mxu0 0
    %602 = vmatmul.mubr.bf16.gmra.mrb[0].mxu0 %v252
    %v603 = vpop.f32.mrb[0].mxu0
    %v604 = vadd.f32 %v507, %v603
    %v605 = vpop.f32.mrb[0].mxu0
    %v606 = vpop.f32.mrb[0].mxu0
    %v607 = vadd.f32 %v510, %v606
    %v608 = vpop.f32.mrb[0].mxu0
    %609 = vmatprep.mubr.bf16.mxu0 0
    %610 = vmatmul.mubr.bf16.gmra.mrb[0].mxu0 %v255
    %v611 = vpop.f32.mrb[0].mxu0
    %v612 = vadd.f32 %v515, %v611
    %v613 = vpop.f32.mrb[0].mxu0
    %v614 = vpop.f32.mrb[0].mxu0
    %v615 = vadd.f32 %v518, %v614
    %v616 = vpop.f32.mrb[0].mxu0
    %617 = vdwg.mxu0
    %vm618 = vcmask 130048
    %v619 = vsel %vm618, %v556, inf
    %620 = vmin.xlane.f32.xlu0 %v619
    %v621 = vpop.xlane.xlu0 %620
    %v622 = vsel %vm618, %v559, inf
    %623 = vmin.xlane.f32.xlu0 %v622
    %v624 = vpop.xlane.xlu0 %623
    %v625 = vsel %vm618, %v564, inf
    %626 = vmin.xlane.f32.xlu0 %v625
    %v627 = vpop.xlane.xlu0 %626
    %v628 = vsel %vm618, %v567, inf
    %629 = vmin.xlane.f32.xlu0 %v628
    %v630 = vpop.xlane.xlu0 %629
    %v631 = vsel %vm618, %v572, inf
    %632 = vmin.xlane.f32.xlu0 %v631
    %v633 = vpop.xlane.xlu0 %632
    %v634 = vsel %vm618, %v575, inf
    %635 = vmin.xlane.f32.xlu0 %v634
    %v636 = vpop.xlane.xlu0 %635
    %v637 = vsel %vm618, %v580, inf
    %638 = vmin.xlane.f32.xlu0 %v637
    %v639 = vpop.xlane.xlu0 %638
    %v640 = vsel %vm618, %v583, inf
    %641 = vmin.xlane.f32.xlu0 %v640
    %v642 = vpop.xlane.xlu0 %641
    %v643 = vsel %vm618, %v588, inf
    %644 = vmin.xlane.f32.xlu0 %v643
    %v645 = vpop.xlane.xlu0 %644
    %v646 = vsel %vm618, %v591, inf
    %647 = vmin.xlane.f32.xlu0 %v646
    %v648 = vpop.xlane.xlu0 %647
    %v649 = vsel %vm618, %v596, inf
    %650 = vmin.xlane.f32.xlu0 %v649
    %v651 = vpop.xlane.xlu0 %650
    %v652 = vsel %vm618, %v599, inf
    %653 = vmin.xlane.f32.xlu0 %v652
    %v654 = vpop.xlane.xlu0 %653
    %v655 = vsel %vm618, %v604, inf
    %656 = vmin.xlane.f32.xlu0 %v655
    %v657 = vpop.xlane.xlu0 %656
    %v658 = vsel %vm618, %v607, inf
    %659 = vmin.xlane.f32.xlu0 %v658
    %v660 = vpop.xlane.xlu0 %659
    %v661 = vsel %vm618, %v612, inf
    %662 = vmin.xlane.f32.xlu0 %v661
    %v663 = vpop.xlane.xlu0 %662
    %v664 = vsel %vm618, %v615, inf
    %665 = vmin.xlane.f32.xlu0 %v664
    %v666 = vpop.xlane.xlu0 %665
    %v667 = vlaneseq
    %v668 = vand.u32 %v667, 127
    %vm669 = vcmp.le.f32.partialorder %v556, %v621
    %vm670 = vcmp.le.f32.partialorder %v559, %v624
    %vm671 = vcmp.le.f32.partialorder %v564, %v627
    %vm672 = vcmp.le.f32.partialorder %v567, %v630
    %vm673 = vcmp.le.f32.partialorder %v572, %v633
    %vm674 = vcmp.le.f32.partialorder %v575, %v636
    %vm675 = vcmp.le.f32.partialorder %v580, %v639
    %vm676 = vcmp.le.f32.partialorder %v583, %v642
    %vm677 = vcmp.le.f32.partialorder %v588, %v645
    %vm678 = vcmp.le.f32.partialorder %v591, %v648
    %vm679 = vcmp.le.f32.partialorder %v596, %v651
    %vm680 = vcmp.le.f32.partialorder %v599, %v654
    %vm681 = vcmp.le.f32.partialorder %v604, %v657
    %vm682 = vcmp.le.f32.partialorder %v607, %v660
    %vm683 = vcmp.le.f32.partialorder %v612, %v663
    %vm684 = vcmp.le.f32.partialorder %v615, %v666
    %v685 = vsel %vm669, %v668, 16
    %v686 = vsel %vm670, %v668, 16
    %v687 = vsel %vm671, %v668, 16
    %v688 = vsel %vm672, %v668, 16
    %v689 = vsel %vm673, %v668, 16
    %v690 = vsel %vm674, %v668, 16
    %v691 = vsel %vm675, %v668, 16
    %v692 = vsel %vm676, %v668, 16
    %v693 = vsel %vm677, %v668, 16
    %v694 = vsel %vm678, %v668, 16
    %v695 = vsel %vm679, %v668, 16
    %v696 = vsel %vm680, %v668, 16
    %v697 = vsel %vm681, %v668, 16
    %v698 = vsel %vm682, %v668, 16
    %v699 = vsel %vm683, %v668, 16
    %v700 = vsel %vm684, %v668, 16
    %v701 = vsel %vm618, %v685, 2147483647
    %v702 = vand.u32 %v701, 65535
    %v703 = vshra.s32 %v701, 16
    %v704 = vcvt.s32.f32 %v702
    %v705 = vcvt.s32.f32 %v703
    %706 = vmin.xlane.f32.xlu0 %v705
    %v707 = vpop.xlane.xlu0 %706
    %vm708 = vcmp.eq.f32.partialorder %v705, %v707
    %v709 = vsel %vm708, %v704, inf
    %710 = vmin.xlane.f32.xlu0 %v709
    %v711 = vpop.xlane.xlu0 %710
    %v712 = vcvt.f32.s32 %v711
    %v713 = vcvt.f32.s32 %v707
    %v714 = vshll.u32 %v713, 16
    %v715 = vadd.s32 %v714, %v712
    %v716 = vsel %vm618, %v686, 2147483647
    %v717 = vand.u32 %v716, 65535
    %v718 = vshra.s32 %v716, 16
    %v719 = vcvt.s32.f32 %v717
    %v720 = vcvt.s32.f32 %v718
    %721 = vmin.xlane.f32.xlu0 %v720
    %v722 = vpop.xlane.xlu0 %721
    %vm723 = vcmp.eq.f32.partialorder %v720, %v722
    %v724 = vsel %vm723, %v719, inf
    %725 = vmin.xlane.f32.xlu0 %v724
    %v726 = vpop.xlane.xlu0 %725
    %v727 = vcvt.f32.s32 %v726
    %v728 = vcvt.f32.s32 %v722
    %v729 = vshll.u32 %v728, 16
    %v730 = vadd.s32 %v729, %v727
    %v731 = vsel %vm618, %v687, 2147483647
    %v732 = vand.u32 %v731, 65535
    %v733 = vshra.s32 %v731, 16
    %v734 = vcvt.s32.f32 %v732
    %v735 = vcvt.s32.f32 %v733
    %736 = vmin.xlane.f32.xlu0 %v735
    %v737 = vpop.xlane.xlu0 %736
    %vm738 = vcmp.eq.f32.partialorder %v735, %v737
    %v739 = vsel %vm738, %v734, inf
    %740 = vmin.xlane.f32.xlu0 %v739
    %v741 = vpop.xlane.xlu0 %740
    %v742 = vcvt.f32.s32 %v741
    %v743 = vcvt.f32.s32 %v737
    %v744 = vshll.u32 %v743, 16
    %v745 = vadd.s32 %v744, %v742
    %v746 = vsel %vm618, %v688, 2147483647
    %v747 = vand.u32 %v746, 65535
    %v748 = vshra.s32 %v746, 16
    %v749 = vcvt.s32.f32 %v747
    %v750 = vcvt.s32.f32 %v748
    %751 = vmin.xlane.f32.xlu0 %v750
    %v752 = vpop.xlane.xlu0 %751
    %vm753 = vcmp.eq.f32.partialorder %v750, %v752
    %v754 = vsel %vm753, %v749, inf
    %755 = vmin.xlane.f32.xlu0 %v754
    %v756 = vpop.xlane.xlu0 %755
    %v757 = vcvt.f32.s32 %v756
    %v758 = vcvt.f32.s32 %v752
    %v759 = vshll.u32 %v758, 16
    %v760 = vadd.s32 %v759, %v757
    %v761 = vsel %vm618, %v689, 2147483647
    %v762 = vand.u32 %v761, 65535
    %v763 = vshra.s32 %v761, 16
    %v764 = vcvt.s32.f32 %v762
    %v765 = vcvt.s32.f32 %v763
    %766 = vmin.xlane.f32.xlu0 %v765
    %v767 = vpop.xlane.xlu0 %766
    %vm768 = vcmp.eq.f32.partialorder %v765, %v767
    %v769 = vsel %vm768, %v764, inf
    %770 = vmin.xlane.f32.xlu0 %v769
    %v771 = vpop.xlane.xlu0 %770
    %v772 = vcvt.f32.s32 %v771
    %v773 = vcvt.f32.s32 %v767
    %v774 = vshll.u32 %v773, 16
    %v775 = vadd.s32 %v774, %v772
    %v776 = vsel %vm618, %v690, 2147483647
    %v777 = vand.u32 %v776, 65535
    %v778 = vshra.s32 %v776, 16
    %v779 = vcvt.s32.f32 %v777
    %v780 = vcvt.s32.f32 %v778
    %781 = vmin.xlane.f32.xlu0 %v780
    %v782 = vpop.xlane.xlu0 %781
    %vm783 = vcmp.eq.f32.partialorder %v780, %v782
    %v784 = vsel %vm783, %v779, inf
    %785 = vmin.xlane.f32.xlu0 %v784
    %v786 = vpop.xlane.xlu0 %785
    %v787 = vcvt.f32.s32 %v786
    %v788 = vcvt.f32.s32 %v782
    %v789 = vshll.u32 %v788, 16
    %v790 = vadd.s32 %v789, %v787
    %v791 = vsel %vm618, %v691, 2147483647
    %v792 = vand.u32 %v791, 65535
    %v793 = vshra.s32 %v791, 16
    %v794 = vcvt.s32.f32 %v792
    %v795 = vcvt.s32.f32 %v793
    %796 = vmin.xlane.f32.xlu0 %v795
    %v797 = vpop.xlane.xlu0 %796
    %vm798 = vcmp.eq.f32.partialorder %v795, %v797
    %v799 = vsel %vm798, %v794, inf
    %800 = vmin.xlane.f32.xlu0 %v799
    %v801 = vpop.xlane.xlu0 %800
    %v802 = vcvt.f32.s32 %v801
    %v803 = vcvt.f32.s32 %v797
    %v804 = vshll.u32 %v803, 16
    %v805 = vadd.s32 %v804, %v802
    %v806 = vsel %vm618, %v692, 2147483647
    %v807 = vand.u32 %v806, 65535
    %v808 = vshra.s32 %v806, 16
    %v809 = vcvt.s32.f32 %v807
    %v810 = vcvt.s32.f32 %v808
    %811 = vmin.xlane.f32.xlu0 %v810
    %v812 = vpop.xlane.xlu0 %811
    %vm813 = vcmp.eq.f32.partialorder %v810, %v812
    %v814 = vsel %vm813, %v809, inf
    %815 = vmin.xlane.f32.xlu0 %v814
    %v816 = vpop.xlane.xlu0 %815
    %v817 = vcvt.f32.s32 %v816
    %v818 = vcvt.f32.s32 %v812
    %v819 = vshll.u32 %v818, 16
    %v820 = vadd.s32 %v819, %v817
    %v821 = vsel %vm618, %v693, 2147483647
    %v822 = vand.u32 %v821, 65535
    %v823 = vshra.s32 %v821, 16
    %v824 = vcvt.s32.f32 %v822
    %v825 = vcvt.s32.f32 %v823
    %826 = vmin.xlane.f32.xlu0 %v825
    %v827 = vpop.xlane.xlu0 %826
    %vm828 = vcmp.eq.f32.partialorder %v825, %v827
    %v829 = vsel %vm828, %v824, inf
    %830 = vmin.xlane.f32.xlu0 %v829
    %v831 = vpop.xlane.xlu0 %830
    %v832 = vcvt.f32.s32 %v831
    %v833 = vcvt.f32.s32 %v827
    %v834 = vshll.u32 %v833, 16
    %v835 = vadd.s32 %v834, %v832
    %v836 = vsel %vm618, %v694, 2147483647
    %v837 = vand.u32 %v836, 65535
    %v838 = vshra.s32 %v836, 16
    %v839 = vcvt.s32.f32 %v837
    %v840 = vcvt.s32.f32 %v838
    %841 = vmin.xlane.f32.xlu0 %v840
    %v842 = vpop.xlane.xlu0 %841
    %vm843 = vcmp.eq.f32.partialorder %v840, %v842
    %v844 = vsel %vm843, %v839, inf
    %845 = vmin.xlane.f32.xlu0 %v844
    %v846 = vpop.xlane.xlu0 %845
    %v847 = vcvt.f32.s32 %v846
    %v848 = vcvt.f32.s32 %v842
    %v849 = vshll.u32 %v848, 16
    %v850 = vadd.s32 %v849, %v847
    %v851 = vsel %vm618, %v695, 2147483647
    %v852 = vand.u32 %v851, 65535
    %v853 = vshra.s32 %v851, 16
    %v854 = vcvt.s32.f32 %v852
    %v855 = vcvt.s32.f32 %v853
    %856 = vmin.xlane.f32.xlu0 %v855
    %v857 = vpop.xlane.xlu0 %856
    %vm858 = vcmp.eq.f32.partialorder %v855, %v857
    %v859 = vsel %vm858, %v854, inf
    %860 = vmin.xlane.f32.xlu0 %v859
    %v861 = vpop.xlane.xlu0 %860
    %v862 = vcvt.f32.s32 %v861
    %v863 = vcvt.f32.s32 %v857
    %v864 = vshll.u32 %v863, 16
    %v865 = vadd.s32 %v864, %v862
    %v866 = vsel %vm618, %v696, 2147483647
    %v867 = vand.u32 %v866, 65535
    %v868 = vshra.s32 %v866, 16
    %v869 = vcvt.s32.f32 %v867
    %v870 = vcvt.s32.f32 %v868
    %871 = vmin.xlane.f32.xlu0 %v870
    %v872 = vpop.xlane.xlu0 %871
    %vm873 = vcmp.eq.f32.partialorder %v870, %v872
    %v874 = vsel %vm873, %v869, inf
    %875 = vmin.xlane.f32.xlu0 %v874
    %v876 = vpop.xlane.xlu0 %875
    %v877 = vcvt.f32.s32 %v876
    %v878 = vcvt.f32.s32 %v872
    %v879 = vshll.u32 %v878, 16
    %v880 = vadd.s32 %v879, %v877
    %v881 = vsel %vm618, %v697, 2147483647
    %v882 = vand.u32 %v881, 65535
    %v883 = vshra.s32 %v881, 16
    %v884 = vcvt.s32.f32 %v882
    %v885 = vcvt.s32.f32 %v883
    %886 = vmin.xlane.f32.xlu0 %v885
    %v887 = vpop.xlane.xlu0 %886
    %vm888 = vcmp.eq.f32.partialorder %v885, %v887
    %v889 = vsel %vm888, %v884, inf
    %890 = vmin.xlane.f32.xlu0 %v889
    %v891 = vpop.xlane.xlu0 %890
    %v892 = vcvt.f32.s32 %v891
    %v893 = vcvt.f32.s32 %v887
    %v894 = vshll.u32 %v893, 16
    %v895 = vadd.s32 %v894, %v892
    %v896 = vsel %vm618, %v698, 2147483647
    %v897 = vand.u32 %v896, 65535
    %v898 = vshra.s32 %v896, 16
    %v899 = vcvt.s32.f32 %v897
    %v900 = vcvt.s32.f32 %v898
    %901 = vmin.xlane.f32.xlu0 %v900
    %v902 = vpop.xlane.xlu0 %901
    %vm903 = vcmp.eq.f32.partialorder %v900, %v902
    %v904 = vsel %vm903, %v899, inf
    %905 = vmin.xlane.f32.xlu0 %v904
    %v906 = vpop.xlane.xlu0 %905
    %v907 = vcvt.f32.s32 %v906
    %v908 = vcvt.f32.s32 %v902
    %v909 = vshll.u32 %v908, 16
    %v910 = vadd.s32 %v909, %v907
    %v911 = vsel %vm618, %v699, 2147483647
    %v912 = vand.u32 %v911, 65535
    %v913 = vshra.s32 %v911, 16
    %v914 = vcvt.s32.f32 %v912
    %v915 = vcvt.s32.f32 %v913
    %916 = vmin.xlane.f32.xlu0 %v915
    %v917 = vpop.xlane.xlu0 %916
    %vm918 = vcmp.eq.f32.partialorder %v915, %v917
    %v919 = vsel %vm918, %v914, inf
    %920 = vmin.xlane.f32.xlu0 %v919
    %v921 = vpop.xlane.xlu0 %920
    %v922 = vcvt.f32.s32 %v921
    %v923 = vcvt.f32.s32 %v917
    %v924 = vshll.u32 %v923, 16
    %v925 = vadd.s32 %v924, %v922
    %v926 = vsel %vm618, %v700, 2147483647
    %v927 = vand.u32 %v926, 65535
    %v928 = vshra.s32 %v926, 16
    %v929 = vcvt.s32.f32 %v927
    %v930 = vcvt.s32.f32 %v928
    %931 = vmin.xlane.f32.xlu0 %v930
    %v932 = vpop.xlane.xlu0 %931
    %vm933 = vcmp.eq.f32.partialorder %v930, %v932
    %v934 = vsel %vm933, %v929, inf
    %935 = vmin.xlane.f32.xlu0 %v934
    %v936 = vpop.xlane.xlu0 %935
    %v937 = vcvt.f32.s32 %v936
    %v938 = vcvt.f32.s32 %v932
    %v939 = vshll.u32 %v938, 16
    %v940 = vadd.s32 %v939, %v937
    %vm941 = vcmp.lt.s32.totalorder %v715, 15
    %v942 = vsel %vm941, %v715, 15
    %vm943 = vcmp.lt.s32.totalorder %v730, 15
    %v944 = vsel %vm943, %v730, 15
    %vm945 = vcmp.lt.s32.totalorder %v745, 15
    %v946 = vsel %vm945, %v745, 15
    %vm947 = vcmp.lt.s32.totalorder %v760, 15
    %v948 = vsel %vm947, %v760, 15
    %vm949 = vcmp.lt.s32.totalorder %v775, 15
    %v950 = vsel %vm949, %v775, 15
    %vm951 = vcmp.lt.s32.totalorder %v790, 15
    %v952 = vsel %vm951, %v790, 15
    %vm953 = vcmp.lt.s32.totalorder %v805, 15
    %v954 = vsel %vm953, %v805, 15
    %vm955 = vcmp.lt.s32.totalorder %v820, 15
    %v956 = vsel %vm955, %v820, 15
    %vm957 = vcmp.lt.s32.totalorder %v835, 15
    %v958 = vsel %vm957, %v835, 15
    %vm959 = vcmp.lt.s32.totalorder %v850, 15
    %v960 = vsel %vm959, %v850, 15
    %vm961 = vcmp.lt.s32.totalorder %v865, 15
    %v962 = vsel %vm961, %v865, 15
    %vm963 = vcmp.lt.s32.totalorder %v880, 15
    %v964 = vsel %vm963, %v880, 15
    %vm965 = vcmp.lt.s32.totalorder %v895, 15
    %v966 = vsel %vm965, %v895, 15
    %vm967 = vcmp.lt.s32.totalorder %v910, 15
    %v968 = vsel %vm967, %v910, 15
    %vm969 = vcmp.lt.s32.totalorder %v925, 15
    %v970 = vsel %vm969, %v925, 15
    %vm971 = vcmp.lt.s32.totalorder %v940, 15
    %v972 = vsel %vm971, %v940, 15
    %vm973 = vcmp.eq.s32.totalorder %v668, %v942
    %vm974 = vcmp.eq.s32.totalorder %v668, %v944
    %vm975 = vcmp.eq.s32.totalorder %v668, %v946
    %vm976 = vcmp.eq.s32.totalorder %v668, %v948
    %vm977 = vcmp.eq.s32.totalorder %v668, %v950
    %vm978 = vcmp.eq.s32.totalorder %v668, %v952
    %vm979 = vcmp.eq.s32.totalorder %v668, %v954
    %vm980 = vcmp.eq.s32.totalorder %v668, %v956
    %vm981 = vcmp.eq.s32.totalorder %v668, %v958
    %vm982 = vcmp.eq.s32.totalorder %v668, %v960
    %vm983 = vcmp.eq.s32.totalorder %v668, %v962
    %vm984 = vcmp.eq.s32.totalorder %v668, %v964
    %vm985 = vcmp.eq.s32.totalorder %v668, %v966
    %vm986 = vcmp.eq.s32.totalorder %v668, %v968
    %vm987 = vcmp.eq.s32.totalorder %v668, %v970
    %vm988 = vcmp.eq.s32.totalorder %v668, %v972
    %v989 = vsel %vm973, 1, 0
    %v990 = vsel %vm974, 1, 0
    %v991 = vsel %vm975, 1, 0
    %v992 = vsel %vm976, 1, 0
    %v993 = vsel %vm977, 1, 0
    %v994 = vsel %vm978, 1, 0
    %v995 = vsel %vm979, 1, 0
    %v996 = vsel %vm980, 1, 0
    %v997 = vsel %vm981, 1, 0
    %v998 = vsel %vm982, 1, 0
    %v999 = vsel %vm983, 1, 0
    %v1000 = vsel %vm984, 1, 0
    %v1001 = vsel %vm985, 1, 0
    %v1002 = vsel %vm986, 1, 0
    %v1003 = vsel %vm987, 1, 0
    %v1004 = vsel %vm988, 1, 0
    %v1005 = vcvt.s32.f32 %v989
    %v1006 = vcvt.s32.f32 %v990
    %v1007 = vcvt.s32.f32 %v991
    %v1008 = vcvt.s32.f32 %v992
    %v1009 = vcvt.s32.f32 %v993
    %v1010 = vcvt.s32.f32 %v994
    %v1011 = vcvt.s32.f32 %v995
    %v1012 = vcvt.s32.f32 %v996
    %v1013 = vcvt.s32.f32 %v997
    %v1014 = vcvt.s32.f32 %v998
    %v1015 = vcvt.s32.f32 %v999
    %v1016 = vcvt.s32.f32 %v1000
    %v1017 = vcvt.s32.f32 %v1001
    %v1018 = vcvt.s32.f32 %v1002
    %v1019 = vcvt.s32.f32 %v1003
    %v1020 = vcvt.s32.f32 %v1004
    %v1021 = vpack.c.bf16 %v1006, %v1005
    %v1022 = vpack.c.bf16 %v1008, %v1007
    %v1023 = vpack.c.bf16 %v1010, %v1009
    %v1024 = vpack.c.bf16 %v1012, %v1011
    %v1025 = vpack.c.bf16 %v1014, %v1013
    %v1026 = vpack.c.bf16 %v1016, %v1015
    %v1027 = vpack.c.bf16 %v1018, %v1017
    %v1028 = vpack.c.bf16 %v1020, %v1019
    %v1029 = vld [vmem:[#allocation7] sm:$0xf]
    %v1030 = vld [vmem:[#allocation7 + $0x4] sm:$0xf]
    %v1031 = vld [vmem:[%s1] sm:$0xff]
    %v1032 = vld [vmem:[%s1 + $0x8] sm:$0xff]
    %v1033 = vld [vmem:[%s1 + $0x10] sm:$0xff]
    %v1034 = vld [vmem:[%s1 + $0x18] sm:$0xff]
    %v1035 = vld [vmem:[%s1 + $0x20] sm:$0xff]
    %v1036 = vld [vmem:[%s1 + $0x28] sm:$0xff]
    %v1037 = vld [vmem:[%s1 + $0x30] sm:$0xff]
    %v1038 = vld [vmem:[%s1 + $0x38] sm:$0xff]
    %v1039 = vld [vmem:[%s1 + $0x40] sm:$0xff]
    %v1040 = vld [vmem:[%s1 + $0x48] sm:$0xff]
    %v1041 = vld [vmem:[%s1 + $0x50] sm:$0xff]
    %v1042 = vld [vmem:[%s1 + $0x58] sm:$0xff]
    %v1043 = vld [vmem:[%s1 + $0x60] sm:$0xff]
    %v1044 = vld [vmem:[%s1 + $0x68] sm:$0xff]
    %v1045 = vld [vmem:[%s1 + $0x70] sm:$0xff]
    %v1046 = vld [vmem:[%s1 + $0x78] sm:$0xff]
    %1048 = vset.pattern.permute.xlu0 0
    %1049 = vperm.xlu0 %1048, %v1031
    %v1050 = vpop.permute.xlu0 %1049
    %1053 = vset.pattern.permute.xlu0 0
    %1054 = vperm.xlu0 %1053, %v1032
    %v1055 = vpop.permute.xlu0 %1054
    %1058 = vset.pattern.permute.xlu0 0
    %1059 = vperm.xlu0 %1058, %v1033
    %v1060 = vpop.permute.xlu0 %1059
    %1063 = vset.pattern.permute.xlu0 0
    %1064 = vperm.xlu0 %1063, %v1034
    %v1065 = vpop.permute.xlu0 %1064
    %1068 = vset.pattern.permute.xlu0 0
    %1069 = vperm.xlu0 %1068, %v1035
    %v1070 = vpop.permute.xlu0 %1069
    %1073 = vset.pattern.permute.xlu0 0
    %1074 = vperm.xlu0 %1073, %v1036
    %v1075 = vpop.permute.xlu0 %1074
    %1078 = vset.pattern.permute.xlu0 0
    %1079 = vperm.xlu0 %1078, %v1037
    %v1080 = vpop.permute.xlu0 %1079
    %1083 = vset.pattern.permute.xlu0 0
    %1084 = vperm.xlu0 %1083, %v1038
    %v1085 = vpop.permute.xlu0 %1084
    %1088 = vset.pattern.permute.xlu0 0
    %1089 = vperm.xlu0 %1088, %v1039
    %v1090 = vpop.permute.xlu0 %1089
    %1093 = vset.pattern.permute.xlu0 0
    %1094 = vperm.xlu0 %1093, %v1040
    %v1095 = vpop.permute.xlu0 %1094
    %1098 = vset.pattern.permute.xlu0 0
    %1099 = vperm.xlu0 %1098, %v1041
    %v1100 = vpop.permute.xlu0 %1099
    %1103 = vset.pattern.permute.xlu0 0
    %1104 = vperm.xlu0 %1103, %v1042
    %v1105 = vpop.permute.xlu0 %1104
    %1108 = vset.pattern.permute.xlu0 0
    %1109 = vperm.xlu0 %1108, %v1043
    %v1110 = vpop.permute.xlu0 %1109
    %1113 = vset.pattern.permute.xlu0 0
    %1114 = vperm.xlu0 %1113, %v1044
    %v1115 = vpop.permute.xlu0 %1114
    %1118 = vset.pattern.permute.xlu0 0
    %1119 = vperm.xlu0 %1118, %v1045
    %v1120 = vpop.permute.xlu0 %1119
    %1123 = vset.pattern.permute.xlu0 0
    %1124 = vperm.xlu0 %1123, %v1046
    %v1125 = vpop.permute.xlu0 %1124
    %v1127 = vmul.f32 %v1050, %v556
    %v1128 = vmul.f32 %v1055, %v559
    %v1129 = vmul.f32 %v1060, %v564
    %v1130 = vmul.f32 %v1065, %v567
    %v1131 = vmul.f32 %v1070, %v572
    %v1132 = vmul.f32 %v1075, %v575
    %v1133 = vmul.f32 %v1080, %v580
    %v1134 = vmul.f32 %v1085, %v583
    %v1135 = vmul.f32 %v1090, %v588
    %v1136 = vmul.f32 %v1095, %v591
    %v1137 = vmul.f32 %v1100, %v596
    %v1138 = vmul.f32 %v1105, %v599
    %v1139 = vmul.f32 %v1110, %v604
    %v1140 = vmul.f32 %v1115, %v607
    %v1141 = vmul.f32 %v1120, %v612
    %v1142 = vmul.f32 %v1125, %v615
    %v1145 = vunpack.c.l.b16 %v1029
    %v1146 = vunpack.c.l.b16 %v1030
    %v1147 = vpack.c.b16 %v1146, %v1145
    %1165 = vrot.lane.b32.xlu0 %v1127, 64
    %v1166 = vpop.permute.xlu0 %1165
    %1167 = vrot.lane.b32.xlu0 %v1128, 64
    %v1168 = vpop.permute.xlu0 %1167
    %1169 = vrot.lane.b32.xlu0 %v1129, 64
    %v1170 = vpop.permute.xlu0 %1169
    %1171 = vrot.lane.b32.xlu0 %v1130, 64
    %v1172 = vpop.permute.xlu0 %1171
    %1173 = vrot.lane.b32.xlu0 %v1131, 64
    %v1174 = vpop.permute.xlu0 %1173
    %1175 = vrot.lane.b32.xlu0 %v1132, 64
    %v1176 = vpop.permute.xlu0 %1175
    %1177 = vrot.lane.b32.xlu0 %v1133, 64
    %v1178 = vpop.permute.xlu0 %1177
    %1179 = vrot.lane.b32.xlu0 %v1134, 64
    %v1180 = vpop.permute.xlu0 %1179
    %1181 = vrot.lane.b32.xlu0 %v1135, 64
    %v1182 = vpop.permute.xlu0 %1181
    %1183 = vrot.lane.b32.xlu0 %v1136, 64
    %v1184 = vpop.permute.xlu0 %1183
    %1185 = vrot.lane.b32.xlu0 %v1137, 64
    %v1186 = vpop.permute.xlu0 %1185
    %1187 = vrot.lane.b32.xlu0 %v1138, 64
    %v1188 = vpop.permute.xlu0 %1187
    %1189 = vrot.lane.b32.xlu0 %v1139, 64
    %v1190 = vpop.permute.xlu0 %1189
    %1191 = vrot.lane.b32.xlu0 %v1140, 64
    %v1192 = vpop.permute.xlu0 %1191
    %1193 = vrot.lane.b32.xlu0 %v1141, 64
    %v1194 = vpop.permute.xlu0 %1193
    %1195 = vrot.lane.b32.xlu0 %v1142, 64
    %v1196 = vpop.permute.xlu0 %1195
    %v1214 = vsel %vm618, %v1021, 0
    %v1217 = vsel %vm618, %v1022, 0
    %v1220 = vsel %vm618, %v1023, 0
    %v1223 = vsel %vm618, %v1024, 0
    %v1226 = vsel %vm618, %v1025, 0
    %v1229 = vsel %vm618, %v1026, 0
    %v1232 = vsel %vm618, %v1027, 0
    %v1235 = vsel %vm618, %v1028, 0
    %1237 = vmatprep.subr.bf16.mxu0 0
    %1238 = vmatpush1.bf16.msra.mxu0 %v1147
    %1239 = vmatprep.subr.bf16.mxu0 0
    %1240 = vmatpush1.bf16.msra.mxu0 0
    %1241 = vmatprep.subr.bf16.mxu0 0
    %1242 = vmatpush1.bf16.msra.mxu0 0
    %1243 = vmatprep.subr.bf16.mxu0 0
    %1244 = vmatpush1.bf16.msra.mxu0 0
    %1245 = vmatprep.subr.bf16.mxu0 0
    %1246 = vmatpush1.bf16.msra.mxu0 0
    %1247 = vmatprep.subr.bf16.mxu0 0
    %1248 = vmatpush1.bf16.msra.mxu0 0
    %1249 = vmatprep.subr.bf16.mxu0 0
    %1250 = vmatpush1.bf16.msra.mxu0 0
    %1251 = vmatprep.subr.bf16.mxu0 0
    %1252 = vmatpush1.bf16.msra.mxu0 0
    %1253 = vmatprep.subr.bf16.mxu0 0
    %1254 = vmatpush1.bf16.msra.mxu0 0
    %1255 = vmatprep.subr.bf16.mxu0 0
    %1256 = vmatpush1.bf16.msra.mxu0 0
    %1257 = vmatprep.subr.bf16.mxu0 0
    %1258 = vmatpush1.bf16.msra.mxu0 0
    %1259 = vmatprep.subr.bf16.mxu0 0
    %1260 = vmatpush1.bf16.msra.mxu0 0
    %1261 = vmatprep.subr.bf16.mxu0 0
    %1262 = vmatpush1.bf16.msra.mxu0 0
    %1263 = vmatprep.subr.bf16.mxu0 0
    %1264 = vmatpush1.bf16.msra.mxu0 0
    %1265 = vmatprep.subr.bf16.mxu0 0
    %1266 = vmatpush1.bf16.msra.mxu0 0
    %1267 = vmatprep.subr.bf16.mxu0 0
    %1268 = vmatpush1.bf16.msra.mxu0 0
    %1269 = vmatprep.mubr.bf16.mxu0 0
    %1270 = vmatmul.mubr.bf16.gmra.mrb[0].mxu0 %v1214
    %v1271 = vpop.f32.mrb[0].mxu0
    %v1272 = vadd.f32 %v1166, %v1271
    %v1273 = vpop.f32.mrb[0].mxu0
    %v1274 = vpop.f32.mrb[0].mxu0
    %v1275 = vadd.f32 %v1168, %v1274
    %v1276 = vpop.f32.mrb[0].mxu0
    %1277 = vmatprep.mubr.bf16.mxu0 0
    %1278 = vmatmul.mubr.bf16.gmra.mrb[0].mxu0 %v1217
    %v1279 = vpop.f32.mrb[0].mxu0
    %v1280 = vadd.f32 %v1170, %v1279
    %v1281 = vpop.f32.mrb[0].mxu0
    %v1282 = vpop.f32.mrb[0].mxu0
    %v1283 = vadd.f32 %v1172, %v1282
    %v1284 = vpop.f32.mrb[0].mxu0
    %1285 = vmatprep.mubr.bf16.mxu0 0
    %1286 = vmatmul.mubr.bf16.gmra.mrb[0].mxu0 %v1220
    %v1287 = vpop.f32.mrb[0].mxu0
    %v1288 = vadd.f32 %v1174, %v1287
    %v1289 = vpop.f32.mrb[0].mxu0
    %v1290 = vpop.f32.mrb[0].mxu0
    %v1291 = vadd.f32 %v1176, %v1290
    %v1292 = vpop.f32.mrb[0].mxu0
    %1293 = vmatprep.mubr.bf16.mxu0 0
    %1294 = vmatmul.mubr.bf16.gmra.mrb[0].mxu0 %v1223
    %v1295 = vpop.f32.mrb[0].mxu0
    %v1296 = vadd.f32 %v1178, %v1295
    %v1297 = vpop.f32.mrb[0].mxu0
    %v1298 = vpop.f32.mrb[0].mxu0
    %v1299 = vadd.f32 %v1180, %v1298
    %v1300 = vpop.f32.mrb[0].mxu0
    %1301 = vmatprep.mubr.bf16.mxu0 0
    %1302 = vmatmul.mubr.bf16.gmra.mrb[0].mxu0 %v1226
    %v1303 = vpop.f32.mrb[0].mxu0
    %v1304 = vadd.f32 %v1182, %v1303
    %v1305 = vpop.f32.mrb[0].mxu0
    %v1306 = vpop.f32.mrb[0].mxu0
    %v1307 = vadd.f32 %v1184, %v1306
    %v1308 = vpop.f32.mrb[0].mxu0
    %1309 = vmatprep.mubr.bf16.mxu0 0
    %1310 = vmatmul.mubr.bf16.gmra.mrb[0].mxu0 %v1229
    %v1311 = vpop.f32.mrb[0].mxu0
    %v1312 = vadd.f32 %v1186, %v1311
    %v1313 = vpop.f32.mrb[0].mxu0
    %v1314 = vpop.f32.mrb[0].mxu0
    %v1315 = vadd.f32 %v1188, %v1314
    %v1316 = vpop.f32.mrb[0].mxu0
    %1317 = vmatprep.mubr.bf16.mxu0 0
    %1318 = vmatmul.mubr.bf16.gmra.mrb[0].mxu0 %v1232
    %v1319 = vpop.f32.mrb[0].mxu0
    %v1320 = vadd.f32 %v1190, %v1319
    %v1321 = vpop.f32.mrb[0].mxu0
    %v1322 = vpop.f32.mrb[0].mxu0
    %v1323 = vadd.f32 %v1192, %v1322
    %v1324 = vpop.f32.mrb[0].mxu0
    %1325 = vmatprep.mubr.bf16.mxu0 0
    %1326 = vmatmul.mubr.bf16.gmra.mrb[0].mxu0 %v1235
    %v1327 = vpop.f32.mrb[0].mxu0
    %v1328 = vadd.f32 %v1194, %v1327
    %v1329 = vpop.f32.mrb[0].mxu0
    %v1330 = vpop.f32.mrb[0].mxu0
    %v1331 = vadd.f32 %v1196, %v1330
    %v1332 = vpop.f32.mrb[0].mxu0
    %1333 = vdwg.mxu0
    %v1334 = vmax.f32 %v1272, 0.0
    %v1335 = vmax.f32 %v1275, 0.0
    %v1336 = vmax.f32 %v1280, 0.0
    %v1337 = vmax.f32 %v1283, 0.0
    %v1338 = vmax.f32 %v1288, 0.0
    %v1339 = vmax.f32 %v1291, 0.0
    %v1340 = vmax.f32 %v1296, 0.0
    %v1341 = vmax.f32 %v1299, 0.0
    %v1342 = vmax.f32 %v1304, 0.0
    %v1343 = vmax.f32 %v1307, 0.0
    %v1344 = vmax.f32 %v1312, 0.0
    %v1345 = vmax.f32 %v1315, 0.0
    %v1346 = vmax.f32 %v1320, 0.0
    %v1347 = vmax.f32 %v1323, 0.0
    %v1348 = vmax.f32 %v1328, 0.0
    %v1349 = vmax.f32 %v1331, 0.0
    %v1350 = vmax.f32 %v556, 0.0
    %v1351 = vmax.f32 %v559, 0.0
    %v1352 = vmax.f32 %v564, 0.0
    %v1353 = vmax.f32 %v567, 0.0
    %v1354 = vmax.f32 %v572, 0.0
    %v1355 = vmax.f32 %v575, 0.0
    %v1356 = vmax.f32 %v580, 0.0
    %v1357 = vmax.f32 %v583, 0.0
    %v1358 = vmax.f32 %v588, 0.0
    %v1359 = vmax.f32 %v591, 0.0
    %v1360 = vmax.f32 %v596, 0.0
    %v1361 = vmax.f32 %v599, 0.0
    %v1362 = vmax.f32 %v604, 0.0
    %v1363 = vmax.f32 %v607, 0.0
    %v1364 = vmax.f32 %v612, 0.0
    %v1365 = vmax.f32 %v615, 0.0
    %v1366 = vpack.c.bf16 %v1335, %v1334
    %v1367 = vpack.c.bf16 %v1337, %v1336
    %v1368 = vpack.c.bf16 %v1339, %v1338
    %v1369 = vpack.c.bf16 %v1341, %v1340
    %v1370 = vpack.c.bf16 %v1343, %v1342
    %v1371 = vpack.c.bf16 %v1345, %v1344
    %v1372 = vpack.c.bf16 %v1347, %v1346
    %v1373 = vpack.c.bf16 %v1349, %v1348
    %v1374 = vld [vmem:[%s4] sm:$0xff]
    %v1375 = vld [vmem:[%s4 + $0x8] sm:$0xff]
    %v1376 = vld [vmem:[%s4 + $0x10] sm:$0xff]
    %v1377 = vld [vmem:[%s4 + $0x18] sm:$0xff]
    %v1378 = vld [vmem:[%s4 + $0x20] sm:$0xff]
    %v1379 = vld [vmem:[%s4 + $0x28] sm:$0xff]
    %v1380 = vld [vmem:[%s4 + $0x30] sm:$0xff]
    %v1381 = vld [vmem:[%s4 + $0x38] sm:$0xff]
    %v1382 = vld [vmem:[%s4 + $0x40] sm:$0xff]
    %v1383 = vld [vmem:[%s4 + $0x48] sm:$0xff]
    %v1384 = vld [vmem:[%s4 + $0x50] sm:$0xff]
    %v1385 = vld [vmem:[%s4 + $0x58] sm:$0xff]
    %v1386 = vld [vmem:[%s4 + $0x60] sm:$0xff]
    %v1387 = vld [vmem:[%s4 + $0x68] sm:$0xff]
    %v1388 = vld [vmem:[%s4 + $0x70] sm:$0xff]
    %v1389 = vld [vmem:[%s4 + $0x78] sm:$0xff]
    %v1390 = vld [vmem:[%s6] sm:$0xf]
    %v1392 = vlaneseq
    %v1393 = vshrl.u32 %v1392, 7
    %v1394 = vsub.s32 0, %v1393
    %v1395 = vrot.slane %v1390, %v1394
    %v1396 = vlaneseq
    %v1397 = vshrl.u32 %v1396, 7
    %v1398 = vsub.s32 1, %v1397
    %v1399 = vrot.slane %v1390, %v1398
    %v1400 = vlaneseq
    %v1401 = vshrl.u32 %v1400, 7
    %v1402 = vsub.s32 2, %v1401
    %v1403 = vrot.slane %v1390, %v1402
    %v1404 = vlaneseq
    %v1405 = vshrl.u32 %v1404, 7
    %v1406 = vsub.s32 3, %v1405
    %v1407 = vrot.slane %v1390, %v1406
    %v1428 = vunpack.c.l.b16 %v1374
    %v1429 = vunpack.c.h.b16 %v1374
    %v1430 = vunpack.c.l.b16 %v1375
    %v1431 = vunpack.c.h.b16 %v1375
    %v1432 = vunpack.c.l.b16 %v1376
    %v1433 = vunpack.c.h.b16 %v1376
    %v1434 = vunpack.c.l.b16 %v1377
    %v1435 = vunpack.c.h.b16 %v1377
    %v1436 = vunpack.c.l.b16 %v1378
    %v1437 = vunpack.c.h.b16 %v1378
    %v1438 = vunpack.c.l.b16 %v1379
    %v1439 = vunpack.c.h.b16 %v1379
    %v1440 = vunpack.c.l.b16 %v1380
    %v1441 = vunpack.c.h.b16 %v1380
    %v1442 = vunpack.c.l.b16 %v1381
    %v1443 = vunpack.c.h.b16 %v1381
    %v1444 = vunpack.c.l.b16 %v1382
    %v1445 = vunpack.c.h.b16 %v1382
    %v1446 = vunpack.c.l.b16 %v1383
    %v1447 = vunpack.c.h.b16 %v1383
    %v1448 = vunpack.c.l.b16 %v1384
    %v1449 = vunpack.c.h.b16 %v1384
    %v1450 = vunpack.c.l.b16 %v1385
    %v1451 = vunpack.c.h.b16 %v1385
    %v1452 = vunpack.c.l.b16 %v1386
    %v1453 = vunpack.c.h.b16 %v1386
    %v1454 = vunpack.c.l.b16 %v1387
    %v1455 = vunpack.c.h.b16 %v1387
    %v1456 = vunpack.c.l.b16 %v1388
    %v1457 = vunpack.c.h.b16 %v1388
    %v1458 = vunpack.c.l.b16 %v1389
    %v1459 = vunpack.c.h.b16 %v1389
    %v1460 = vpack.c.b16 %v1432, %v1428
    %v1461 = vpack.c.b16 %v1433, %v1429
    %v1462 = vpack.c.b16 %v1434, %v1430
    %v1463 = vpack.c.b16 %v1435, %v1431
    %v1464 = vpack.c.b16 %v1440, %v1436
    %v1465 = vpack.c.b16 %v1441, %v1437
    %v1466 = vpack.c.b16 %v1442, %v1438
    %v1467 = vpack.c.b16 %v1443, %v1439
    %v1468 = vpack.c.b16 %v1448, %v1444
    %v1469 = vpack.c.b16 %v1449, %v1445
    %v1470 = vpack.c.b16 %v1450, %v1446
    %v1471 = vpack.c.b16 %v1451, %v1447
    %v1472 = vpack.c.b16 %v1456, %v1452
    %v1473 = vpack.c.b16 %v1457, %v1453
    %v1474 = vpack.c.b16 %v1458, %v1454
    %v1475 = vpack.c.b16 %v1459, %v1455
    %vm1492 = vcmask 523264
    %v1494 = vsel %vm1492, %v1366, 0
    %v1497 = vsel %vm1492, %v1367, 0
    %v1500 = vsel %vm1492, %v1368, 0
    %v1503 = vsel %vm1492, %v1369, 0
    %v1506 = vsel %vm1492, %v1370, 0
    %v1509 = vsel %vm1492, %v1371, 0
    %v1512 = vsel %vm1492, %v1372, 0
    %v1515 = vsel %vm1492, %v1373, 0
    %1517 = vmatprep.subr.bf16.mxu0 %v1461
    %1518 = vmatpush1.bf16.msra.mxu0 %v1460
    %1519 = vmatprep.subr.bf16.mxu0 %v1465
    %1520 = vmatpush1.bf16.msra.mxu0 %v1464
    %1521 = vmatprep.subr.bf16.mxu0 %v1469
    %1522 = vmatpush1.bf16.msra.mxu0 %v1468
    %1523 = vmatprep.subr.bf16.mxu0 %v1473
    %1524 = vmatpush1.bf16.msra.mxu0 %v1472
    %1525 = vmatprep.subr.bf16.mxu0 0
    %1526 = vmatpush1.bf16.msra.mxu0 0
    %1527 = vmatprep.subr.bf16.mxu0 0
    %1528 = vmatpush1.bf16.msra.mxu0 0
    %1529 = vmatprep.subr.bf16.mxu0 0
    %1530 = vmatpush1.bf16.msra.mxu0 0
    %1531 = vmatprep.subr.bf16.mxu0 0
    %1532 = vmatpush1.bf16.msra.mxu0 0
    %1533 = vmatprep.subr.bf16.mxu0 0
    %1534 = vmatpush1.bf16.msra.mxu0 0
    %1535 = vmatprep.subr.bf16.mxu0 0
    %1536 = vmatpush1.bf16.msra.mxu0 0
    %1537 = vmatprep.subr.bf16.mxu0 0
    %1538 = vmatpush1.bf16.msra.mxu0 0
    %1539 = vmatprep.subr.bf16.mxu0 0
    %1540 = vmatpush1.bf16.msra.mxu0 0
    %1541 = vmatprep.subr.bf16.mxu0 0
    %1542 = vmatpush1.bf16.msra.mxu0 0
    %1543 = vmatprep.subr.bf16.mxu0 0
    %1544 = vmatpush1.bf16.msra.mxu0 0
    %1545 = vmatprep.subr.bf16.mxu0 0
    %1546 = vmatpush1.bf16.msra.mxu0 0
    %1547 = vmatprep.subr.bf16.mxu0 0
    %1548 = vmatpush1.bf16.msra.mxu0 0
    %1549 = vmatprep.mubr.bf16.mxu0 0
    %1550 = vmatmul.mubr.bf16.gmra.mrb[0].mxu0 %v1494
    %v1551 = vpop.f32.mrb[0].mxu0
    %v1552 = vadd.f32 %v1395, %v1551
    %v1553 = vpop.f32.mrb[0].mxu0
    %v1554 = vadd.f32 %v1399, %v1553
    %v1555 = vpop.f32.mrb[0].mxu0
    %v1556 = vadd.f32 %v1395, %v1555
    %v1557 = vpop.f32.mrb[0].mxu0
    %v1558 = vadd.f32 %v1399, %v1557
    %1559 = vmatprep.mubr.bf16.mxu0 0
    %1560 = vmatmul.mubr.bf16.gmra.mrb[0].mxu0 %v1497
    %v1561 = vpop.f32.mrb[0].mxu0
    %v1562 = vadd.f32 %v1395, %v1561
    %v1563 = vpop.f32.mrb[0].mxu0
    %v1564 = vadd.f32 %v1399, %v1563
    %v1565 = vpop.f32.mrb[0].mxu0
    %v1566 = vadd.f32 %v1395, %v1565
    %v1567 = vpop.f32.mrb[0].mxu0
    %v1568 = vadd.f32 %v1399, %v1567
    %1569 = vmatprep.mubr.bf16.mxu0 0
    %1570 = vmatmul.mubr.bf16.gmra.mrb[0].mxu0 %v1500
    %v1571 = vpop.f32.mrb[0].mxu0
    %v1572 = vadd.f32 %v1395, %v1571
    %v1573 = vpop.f32.mrb[0].mxu0
    %v1574 = vadd.f32 %v1399, %v1573
    %v1575 = vpop.f32.mrb[0].mxu0
    %v1576 = vadd.f32 %v1395, %v1575
    %v1577 = vpop.f32.mrb[0].mxu0
    %v1578 = vadd.f32 %v1399, %v1577
    %1579 = vmatprep.mubr.bf16.mxu0 0
    %1580 = vmatmul.mubr.bf16.gmra.mrb[0].mxu0 %v1503
    %v1581 = vpop.f32.mrb[0].mxu0
    %v1582 = vadd.f32 %v1395, %v1581
    %v1583 = vpop.f32.mrb[0].mxu0
    %v1584 = vadd.f32 %v1399, %v1583
    %v1585 = vpop.f32.mrb[0].mxu0
    %v1586 = vadd.f32 %v1395, %v1585
    %v1587 = vpop.f32.mrb[0].mxu0
    %v1588 = vadd.f32 %v1399, %v1587
    %1589 = vmatprep.mubr.bf16.mxu0 0
    %1590 = vmatmul.mubr.bf16.gmra.mrb[0].mxu0 %v1506
    %v1591 = vpop.f32.mrb[0].mxu0
    %v1592 = vadd.f32 %v1395, %v1591
    %v1593 = vpop.f32.mrb[0].mxu0
    %v1594 = vadd.f32 %v1399, %v1593
    %v1595 = vpop.f32.mrb[0].mxu0
    %v1596 = vadd.f32 %v1395, %v1595
    %v1597 = vpop.f32.mrb[0].mxu0
    %v1598 = vadd.f32 %v1399, %v1597
    %1599 = vmatprep.mubr.bf16.mxu0 0
    %1600 = vmatmul.mubr.bf16.gmra.mrb[0].mxu0 %v1509
    %v1601 = vpop.f32.mrb[0].mxu0
    %v1602 = vadd.f32 %v1395, %v1601
    %v1603 = vpop.f32.mrb[0].mxu0
    %v1604 = vadd.f32 %v1399, %v1603
    %v1605 = vpop.f32.mrb[0].mxu0
    %v1606 = vadd.f32 %v1395, %v1605
    %v1607 = vpop.f32.mrb[0].mxu0
    %v1608 = vadd.f32 %v1399, %v1607
    %1609 = vmatprep.mubr.bf16.mxu0 0
    %1610 = vmatmul.mubr.bf16.gmra.mrb[0].mxu0 %v1512
    %v1611 = vpop.f32.mrb[0].mxu0
    %v1612 = vadd.f32 %v1395, %v1611
    %v1613 = vpop.f32.mrb[0].mxu0
    %v1614 = vadd.f32 %v1399, %v1613
    %v1615 = vpop.f32.mrb[0].mxu0
    %v1616 = vadd.f32 %v1395, %v1615
    %v1617 = vpop.f32.mrb[0].mxu0
    %v1618 = vadd.f32 %v1399, %v1617
    %1619 = vmatprep.mubr.bf16.mxu0 0
    %1620 = vmatmul.mubr.bf16.gmra.mrb[0].mxu0 %v1515
    %v1621 = vpop.f32.mrb[0].mxu0
    %v1622 = vadd.f32 %v1395, %v1621
    %v1623 = vpop.f32.mrb[0].mxu0
    %v1624 = vadd.f32 %v1399, %v1623
    %v1625 = vpop.f32.mrb[0].mxu0
    %v1626 = vadd.f32 %v1395, %v1625
    %v1627 = vpop.f32.mrb[0].mxu0
    %v1628 = vadd.f32 %v1399, %v1627
    %1629 = vdwg.mxu0
    %1630 = vmatprep.subr.bf16.mxu0 %v1463
    %1631 = vmatpush1.bf16.msra.mxu0 %v1462
    %1632 = vmatprep.subr.bf16.mxu0 %v1467
    %1633 = vmatpush1.bf16.msra.mxu0 %v1466
    %1634 = vmatprep.subr.bf16.mxu0 %v1471
    %1635 = vmatpush1.bf16.msra.mxu0 %v1470
    %1636 = vmatprep.subr.bf16.mxu0 %v1475
    %1637 = vmatpush1.bf16.msra.mxu0 %v1474
    %1638 = vmatprep.subr.bf16.mxu0 0
    %1639 = vmatpush1.bf16.msra.mxu0 0
    %1640 = vmatprep.subr.bf16.mxu0 0
    %1641 = vmatpush1.bf16.msra.mxu0 0
    %1642 = vmatprep.subr.bf16.mxu0 0
    %1643 = vmatpush1.bf16.msra.mxu0 0
    %1644 = vmatprep.subr.bf16.mxu0 0
    %1645 = vmatpush1.bf16.msra.mxu0 0
    %1646 = vmatprep.subr.bf16.mxu0 0
    %1647 = vmatpush1.bf16.msra.mxu0 0
    %1648 = vmatprep.subr.bf16.mxu0 0
    %1649 = vmatpush1.bf16.msra.mxu0 0
    %1650 = vmatprep.subr.bf16.mxu0 0
    %1651 = vmatpush1.bf16.msra.mxu0 0
    %1652 = vmatprep.subr.bf16.mxu0 0
    %1653 = vmatpush1.bf16.msra.mxu0 0
    %1654 = vmatprep.subr.bf16.mxu0 0
    %1655 = vmatpush1.bf16.msra.mxu0 0
    %1656 = vmatprep.subr.bf16.mxu0 0
    %1657 = vmatpush1.bf16.msra.mxu0 0
    %1658 = vmatprep.subr.bf16.mxu0 0
    %1659 = vmatpush1.bf16.msra.mxu0 0
    %1660 = vmatprep.subr.bf16.mxu0 0
    %1661 = vmatpush1.bf16.msra.mxu0 0
    %1662 = vmatprep.mubr.bf16.mxu0 0
    %1663 = vmatmul.mubr.bf16.gmra.mrb[0].mxu0 %v1494
    %v1664 = vpop.f32.mrb[0].mxu0
    %v1665 = vadd.f32 %v1403, %v1664
    %v1666 = vpop.f32.mrb[0].mxu0
    %v1667 = vadd.f32 %v1407, %v1666
    %v1668 = vpop.f32.mrb[0].mxu0
    %v1669 = vadd.f32 %v1403, %v1668
    %v1670 = vpop.f32.mrb[0].mxu0
    %v1671 = vadd.f32 %v1407, %v1670
    %1672 = vmatprep.mubr.bf16.mxu0 0
    %1673 = vmatmul.mubr.bf16.gmra.mrb[0].mxu0 %v1497
    %v1674 = vpop.f32.mrb[0].mxu0
    %v1675 = vadd.f32 %v1403, %v1674
    %v1676 = vpop.f32.mrb[0].mxu0
    %v1677 = vadd.f32 %v1407, %v1676
    %v1678 = vpop.f32.mrb[0].mxu0
    %v1679 = vadd.f32 %v1403, %v1678
    %v1680 = vpop.f32.mrb[0].mxu0
    %v1681 = vadd.f32 %v1407, %v1680
    %1682 = vmatprep.mubr.bf16.mxu0 0
    %1683 = vmatmul.mubr.bf16.gmra.mrb[0].mxu0 %v1500
    %v1684 = vpop.f32.mrb[0].mxu0
    %v1685 = vadd.f32 %v1403, %v1684
    %v1686 = vpop.f32.mrb[0].mxu0
    %v1687 = vadd.f32 %v1407, %v1686
    %v1688 = vpop.f32.mrb[0].mxu0
    %v1689 = vadd.f32 %v1403, %v1688
    %v1690 = vpop.f32.mrb[0].mxu0
    %v1691 = vadd.f32 %v1407, %v1690
    %1692 = vmatprep.mubr.bf16.mxu0 0
    %1693 = vmatmul.mubr.bf16.gmra.mrb[0].mxu0 %v1503
    %v1694 = vpop.f32.mrb[0].mxu0
    %v1695 = vadd.f32 %v1403, %v1694
    %v1696 = vpop.f32.mrb[0].mxu0
    %v1697 = vadd.f32 %v1407, %v1696
    %v1698 = vpop.f32.mrb[0].mxu0
    %v1699 = vadd.f32 %v1403, %v1698
    %v1700 = vpop.f32.mrb[0].mxu0
    %v1701 = vadd.f32 %v1407, %v1700
    %1702 = vmatprep.mubr.bf16.mxu0 0
    %1703 = vmatmul.mubr.bf16.gmra.mrb[0].mxu0 %v1506
    %v1704 = vpop.f32.mrb[0].mxu0
    %v1705 = vadd.f32 %v1403, %v1704
    %v1706 = vpop.f32.mrb[0].mxu0
    %v1707 = vadd.f32 %v1407, %v1706
    %v1708 = vpop.f32.mrb[0].mxu0
    %v1709 = vadd.f32 %v1403, %v1708
    %v1710 = vpop.f32.mrb[0].mxu0
    %v1711 = vadd.f32 %v1407, %v1710
    %1712 = vmatprep.mubr.bf16.mxu0 0
    %1713 = vmatmul.mubr.bf16.gmra.mrb[0].mxu0 %v1509
    %v1714 = vpop.f32.mrb[0].mxu0
    %v1715 = vadd.f32 %v1403, %v1714
    %v1716 = vpop.f32.mrb[0].mxu0
    %v1717 = vadd.f32 %v1407, %v1716
    %v1718 = vpop.f32.mrb[0].mxu0
    %v1719 = vadd.f32 %v1403, %v1718
    %v1720 = vpop.f32.mrb[0].mxu0
    %v1721 = vadd.f32 %v1407, %v1720
    %1722 = vmatprep.mubr.bf16.mxu0 0
    %1723 = vmatmul.mubr.bf16.gmra.mrb[0].mxu0 %v1512
    %v1724 = vpop.f32.mrb[0].mxu0
    %v1725 = vadd.f32 %v1403, %v1724
    %v1726 = vpop.f32.mrb[0].mxu0
    %v1727 = vadd.f32 %v1407, %v1726
    %v1728 = vpop.f32.mrb[0].mxu0
    %v1729 = vadd.f32 %v1403, %v1728
    %v1730 = vpop.f32.mrb[0].mxu0
    %v1731 = vadd.f32 %v1407, %v1730
    %1732 = vmatprep.mubr.bf16.mxu0 0
    %1733 = vmatmul.mubr.bf16.gmra.mrb[0].mxu0 %v1515
    %v1734 = vpop.f32.mrb[0].mxu0
    %v1735 = vadd.f32 %v1403, %v1734
    %v1736 = vpop.f32.mrb[0].mxu0
    %v1737 = vadd.f32 %v1407, %v1736
    %v1738 = vpop.f32.mrb[0].mxu0
    %v1739 = vadd.f32 %v1403, %v1738
    %v1740 = vpop.f32.mrb[0].mxu0
    %v1741 = vadd.f32 %v1407, %v1740
    %1742 = vdwg.mxu0
    %v1743 = vpack.c.bf16 %v1351, %v1350
    %v1744 = vpack.c.bf16 %v1353, %v1352
    %v1745 = vpack.c.bf16 %v1355, %v1354
    %v1746 = vpack.c.bf16 %v1357, %v1356
    %v1747 = vpack.c.bf16 %v1359, %v1358
    %v1748 = vpack.c.bf16 %v1361, %v1360
    %v1749 = vpack.c.bf16 %v1363, %v1362
    %v1750 = vpack.c.bf16 %v1365, %v1364
    %v1751 = vld [vmem:[%s5] sm:$0xf]
    %v1752 = vld [vmem:[%s5 + $0x4] sm:$0xf]
    %v1753 = vld [vmem:[%s5 + $0x8] sm:$0xf]
    %v1754 = vld [vmem:[%s5 + $0xc] sm:$0xf]
    %1763 = vrot.lane.b32.xlu0 %v1743, 112
    %v1764 = vpop.permute.xlu0 %1763
    %1765 = vrot.lane.b32.xlu0 %v1744, 112
    %v1766 = vpop.permute.xlu0 %1765
    %1767 = vrot.lane.b32.xlu0 %v1745, 112
    %v1768 = vpop.permute.xlu0 %1767
    %1769 = vrot.lane.b32.xlu0 %v1746, 112
    %v1770 = vpop.permute.xlu0 %1769
    %1771 = vrot.lane.b32.xlu0 %v1747, 112
    %v1772 = vpop.permute.xlu0 %1771
    %1773 = vrot.lane.b32.xlu0 %v1748, 112
    %v1774 = vpop.permute.xlu0 %1773
    %1775 = vrot.lane.b32.xlu0 %v1749, 112
    %v1776 = vpop.permute.xlu0 %1775
    %1777 = vrot.lane.b32.xlu0 %v1750, 112
    %v1778 = vpop.permute.xlu0 %1777
    %v1783 = vunpack.c.l.b16 %v1751
    %v1784 = vunpack.c.l.b16 %v1752
    %v1785 = vunpack.c.l.b16 %v1753
    %v1786 = vunpack.c.l.b16 %v1754
    %v1787 = vpack.c.b16 %v1784, %v1783
    %v1788 = vpack.c.b16 %v1786, %v1785
    %vm1791 = vcmask 261120
    %v1793 = vsel %vm1791, %v1764, 0
    %v1796 = vsel %vm1791, %v1766, 0
    %v1799 = vsel %vm1791, %v1768, 0
    %v1802 = vsel %vm1791, %v1770, 0
    %v1805 = vsel %vm1791, %v1772, 0
    %v1808 = vsel %vm1791, %v1774, 0
    %v1811 = vsel %vm1791, %v1776, 0
    %v1814 = vsel %vm1791, %v1778, 0
    %1816 = vmatprep.subr.bf16.mxu0 0
    %1817 = vmatpush1.bf16.msra.mxu0 %v1787
    %1818 = vmatprep.subr.bf16.mxu0 0
    %1819 = vmatpush1.bf16.msra.mxu0 %v1788
    %1820 = vmatprep.subr.bf16.mxu0 0
    %1821 = vmatpush1.bf16.msra.mxu0 0
    %1822 = vmatprep.subr.bf16.mxu0 0
    %1823 = vmatpush1.bf16.msra.mxu0 0
    %1824 = vmatprep.subr.bf16.mxu0 0
    %1825 = vmatpush1.bf16.msra.mxu0 0
    %1826 = vmatprep.subr.bf16.mxu0 0
    %1827 = vmatpush1.bf16.msra.mxu0 0
    %1828 = vmatprep.subr.bf16.mxu0 0
    %1829 = vmatpush1.bf16.msra.mxu0 0
    %1830 = vmatprep.subr.bf16.mxu0 0
    %1831 = vmatpush1.bf16.msra.mxu0 0
    %1832 = vmatprep.subr.bf16.mxu0 0
    %1833 = vmatpush1.bf16.msra.mxu0 0
    %1834 = vmatprep.subr.bf16.mxu0 0
    %1835 = vmatpush1.bf16.msra.mxu0 0
    %1836 = vmatprep.subr.bf16.mxu0 0
    %1837 = vmatpush1.bf16.msra.mxu0 0
    %1838 = vmatprep.subr.bf16.mxu0 0
    %1839 = vmatpush1.bf16.msra.mxu0 0
    %1840 = vmatprep.subr.bf16.mxu0 0
    %1841 = vmatpush1.bf16.msra.mxu0 0
    %1842 = vmatprep.subr.bf16.mxu0 0
    %1843 = vmatpush1.bf16.msra.mxu0 0
    %1844 = vmatprep.subr.bf16.mxu0 0
    %1845 = vmatpush1.bf16.msra.mxu0 0
    %1846 = vmatprep.subr.bf16.mxu0 0
    %1847 = vmatpush1.bf16.msra.mxu0 0
    %1848 = vmatprep.mubr.bf16.mxu0 0
    %1849 = vmatmul.mubr.bf16.gmra.mrb[0].mxu0 %v1793
    %v1850 = vpop.f32.mrb[0].mxu0
    %v1851 = vadd.f32 0.0, %v1850
    %v1852 = vpop.f32.mrb[0].mxu0
    %v1853 = vpop.f32.mrb[0].mxu0
    %v1854 = vadd.f32 0.0, %v1853
    %v1855 = vpop.f32.mrb[0].mxu0
    %1856 = vmatprep.mubr.bf16.mxu0 0
    %1857 = vmatmul.mubr.bf16.gmra.mrb[0].mxu0 %v1796
    %v1858 = vpop.f32.mrb[0].mxu0
    %v1859 = vadd.f32 0.0, %v1858
    %v1860 = vpop.f32.mrb[0].mxu0
    %v1861 = vpop.f32.mrb[0].mxu0
    %v1862 = vadd.f32 0.0, %v1861
    %v1863 = vpop.f32.mrb[0].mxu0
    %1864 = vmatprep.mubr.bf16.mxu0 0
    %1865 = vmatmul.mubr.bf16.gmra.mrb[0].mxu0 %v1799
    %v1866 = vpop.f32.mrb[0].mxu0
    %v1867 = vadd.f32 0.0, %v1866
    %v1868 = vpop.f32.mrb[0].mxu0
    %v1869 = vpop.f32.mrb[0].mxu0
    %v1870 = vadd.f32 0.0, %v1869
    %v1871 = vpop.f32.mrb[0].mxu0
    %1872 = vmatprep.mubr.bf16.mxu0 0
    %1873 = vmatmul.mubr.bf16.gmra.mrb[0].mxu0 %v1802
    %v1874 = vpop.f32.mrb[0].mxu0
    %v1875 = vadd.f32 0.0, %v1874
    %v1876 = vpop.f32.mrb[0].mxu0
    %v1877 = vpop.f32.mrb[0].mxu0
    %v1878 = vadd.f32 0.0, %v1877
    %v1879 = vpop.f32.mrb[0].mxu0
    %1880 = vmatprep.mubr.bf16.mxu0 0
    %1881 = vmatmul.mubr.bf16.gmra.mrb[0].mxu0 %v1805
    %v1882 = vpop.f32.mrb[0].mxu0
    %v1883 = vadd.f32 0.0, %v1882
    %v1884 = vpop.f32.mrb[0].mxu0
    %v1885 = vpop.f32.mrb[0].mxu0
    %v1886 = vadd.f32 0.0, %v1885
    %v1887 = vpop.f32.mrb[0].mxu0
    %1888 = vmatprep.mubr.bf16.mxu0 0
    %1889 = vmatmul.mubr.bf16.gmra.mrb[0].mxu0 %v1808
    %v1890 = vpop.f32.mrb[0].mxu0
    %v1891 = vadd.f32 0.0, %v1890
    %v1892 = vpop.f32.mrb[0].mxu0
    %v1893 = vpop.f32.mrb[0].mxu0
    %v1894 = vadd.f32 0.0, %v1893
    %v1895 = vpop.f32.mrb[0].mxu0
    %1896 = vmatprep.mubr.bf16.mxu0 0
    %1897 = vmatmul.mubr.bf16.gmra.mrb[0].mxu0 %v1811
    %v1898 = vpop.f32.mrb[0].mxu0
    %v1899 = vadd.f32 0.0, %v1898
    %v1900 = vpop.f32.mrb[0].mxu0
    %v1901 = vpop.f32.mrb[0].mxu0
    %v1902 = vadd.f32 0.0, %v1901
    %v1903 = vpop.f32.mrb[0].mxu0
    %1904 = vmatprep.mubr.bf16.mxu0 0
    %1905 = vmatmul.mubr.bf16.gmra.mrb[0].mxu0 %v1814
    %v1906 = vpop.f32.mrb[0].mxu0
    %v1907 = vadd.f32 0.0, %v1906
    %v1908 = vpop.f32.mrb[0].mxu0
    %v1909 = vpop.f32.mrb[0].mxu0
    %v1910 = vadd.f32 0.0, %v1909
    %v1911 = vpop.f32.mrb[0].mxu0
    %1912 = vdwg.mxu0
    %v1913 = vadd.f32 %v1667, %v1851
    %v1914 = vadd.f32 %v1671, %v1854
    %v1915 = vadd.f32 %v1677, %v1859
    %v1916 = vadd.f32 %v1681, %v1862
    %v1917 = vadd.f32 %v1687, %v1867
    %v1918 = vadd.f32 %v1691, %v1870
    %v1919 = vadd.f32 %v1697, %v1875
    %v1920 = vadd.f32 %v1701, %v1878
    %v1921 = vadd.f32 %v1707, %v1883
    %v1922 = vadd.f32 %v1711, %v1886
    %v1923 = vadd.f32 %v1717, %v1891
    %v1924 = vadd.f32 %v1721, %v1894
    %v1925 = vadd.f32 %v1727, %v1899
    %v1926 = vadd.f32 %v1731, %v1902
    %v1927 = vadd.f32 %v1737, %v1907
    %v1928 = vadd.f32 %v1741, %v1910
    %v1929 = vpack.c.bf16 %v1556, %v1552
    %v1930 = vpack.c.bf16 %v1558, %v1554
    %v1931 = vpack.c.bf16 %v1669, %v1665
    %v1932 = vpack.c.bf16 %v1566, %v1562
    %v1933 = vpack.c.bf16 %v1568, %v1564
    %v1934 = vpack.c.bf16 %v1679, %v1675
    %v1935 = vpack.c.bf16 %v1576, %v1572
    %v1936 = vpack.c.bf16 %v1578, %v1574
    %v1937 = vpack.c.bf16 %v1689, %v1685
    %v1938 = vpack.c.bf16 %v1586, %v1582
    %v1939 = vpack.c.bf16 %v1588, %v1584
    %v1940 = vpack.c.bf16 %v1699, %v1695
    %v1941 = vpack.c.bf16 %v1596, %v1592
    %v1942 = vpack.c.bf16 %v1598, %v1594
    %v1943 = vpack.c.bf16 %v1709, %v1705
    %v1944 = vpack.c.bf16 %v1606, %v1602
    %v1945 = vpack.c.bf16 %v1608, %v1604
    %v1946 = vpack.c.bf16 %v1719, %v1715
    %v1947 = vpack.c.bf16 %v1616, %v1612
    %v1948 = vpack.c.bf16 %v1618, %v1614
    %v1949 = vpack.c.bf16 %v1729, %v1725
    %v1950 = vpack.c.bf16 %v1626, %v1622
    %v1951 = vpack.c.bf16 %v1628, %v1624
    %v1952 = vpack.c.bf16 %v1739, %v1735
    %v1977 = vunpack.c.l.b16 %v1929
    %v1978 = vunpack.c.l.b16 %v1930
    %v1979 = vunpack.c.l.b16 %v1931
    %v1980 = vunpack.c.h.b16 %v1929
    %v1981 = vunpack.c.h.b16 %v1930
    %v1982 = vunpack.c.h.b16 %v1931
    %v1983 = vunpack.c.l.b16 %v1932
    %v1984 = vunpack.c.l.b16 %v1933
    %v1985 = vunpack.c.l.b16 %v1934
    %v1986 = vunpack.c.h.b16 %v1932
    %v1987 = vunpack.c.h.b16 %v1933
    %v1988 = vunpack.c.h.b16 %v1934
    %v1989 = vunpack.c.l.b16 %v1935
    %v1990 = vunpack.c.l.b16 %v1936
    %v1991 = vunpack.c.l.b16 %v1937
    %v1992 = vunpack.c.h.b16 %v1935
    %v1993 = vunpack.c.h.b16 %v1936
    %v1994 = vunpack.c.h.b16 %v1937
    %v1995 = vunpack.c.l.b16 %v1938
    %v1996 = vunpack.c.l.b16 %v1939
    %v1997 = vunpack.c.l.b16 %v1940
    %v1998 = vunpack.c.h.b16 %v1938
    %v1999 = vunpack.c.h.b16 %v1939
    %v2000 = vunpack.c.h.b16 %v1940
    %v2001 = vunpack.c.l.b16 %v1941
    %v2002 = vunpack.c.l.b16 %v1942
    %v2003 = vunpack.c.l.b16 %v1943
    %v2004 = vunpack.c.h.b16 %v1941
    %v2005 = vunpack.c.h.b16 %v1942
    %v2006 = vunpack.c.h.b16 %v1943
    %v2007 = vunpack.c.l.b16 %v1944
    %v2008 = vunpack.c.l.b16 %v1945
    %v2009 = vunpack.c.l.b16 %v1946
    %v2010 = vunpack.c.h.b16 %v1944
    %v2011 = vunpack.c.h.b16 %v1945
    %v2012 = vunpack.c.h.b16 %v1946
    %v2013 = vunpack.c.l.b16 %v1947
    %v2014 = vunpack.c.l.b16 %v1948
    %v2015 = vunpack.c.l.b16 %v1949
    %v2016 = vunpack.c.h.b16 %v1947
    %v2017 = vunpack.c.h.b16 %v1948
    %v2018 = vunpack.c.h.b16 %v1949
    %v2019 = vunpack.c.l.b16 %v1950
    %v2020 = vunpack.c.l.b16 %v1951
    %v2021 = vunpack.c.l.b16 %v1952
    %v2022 = vunpack.c.h.b16 %v1950
    %v2023 = vunpack.c.h.b16 %v1951
    %v2024 = vunpack.c.h.b16 %v1952
    %v2025 = vpack.c.b16 %v1978, %v1977
    %v2026 = vpack.c.b16 %v1979, %v1979
    %v2027 = vpack.c.b16 %v1981, %v1980
    %v2028 = vpack.c.b16 %v1982, %v1982
    %v2029 = vpack.c.b16 %v1984, %v1983
    %v2030 = vpack.c.b16 %v1985, %v1985
    %v2031 = vpack.c.b16 %v1987, %v1986
    %v2032 = vpack.c.b16 %v1988, %v1988
    %v2033 = vpack.c.b16 %v1990, %v1989
    %v2034 = vpack.c.b16 %v1991, %v1991
    %v2035 = vpack.c.b16 %v1993, %v1992
    %v2036 = vpack.c.b16 %v1994, %v1994
    %v2037 = vpack.c.b16 %v1996, %v1995
    %v2038 = vpack.c.b16 %v1997, %v1997
    %v2039 = vpack.c.b16 %v1999, %v1998
    %v2040 = vpack.c.b16 %v2000, %v2000
    %v2041 = vpack.c.b16 %v2002, %v2001
    %v2042 = vpack.c.b16 %v2003, %v2003
    %v2043 = vpack.c.b16 %v2005, %v2004
    %v2044 = vpack.c.b16 %v2006, %v2006
    %v2045 = vpack.c.b16 %v2008, %v2007
    %v2046 = vpack.c.b16 %v2009, %v2009
    %v2047 = vpack.c.b16 %v2011, %v2010
    %v2048 = vpack.c.b16 %v2012, %v2012
    %v2049 = vpack.c.b16 %v2014, %v2013
    %v2050 = vpack.c.b16 %v2015, %v2015
    %v2051 = vpack.c.b16 %v2017, %v2016
    %v2052 = vpack.c.b16 %v2018, %v2018
    %v2053 = vpack.c.b16 %v2020, %v2019
    %v2054 = vpack.c.b16 %v2021, %v2021
    %v2055 = vpack.c.b16 %v2023, %v2022
    %v2056 = vpack.c.b16 %v2024, %v2024
    %2089 = vst [vmem:[#allocation8] sm:$0xff] %v2025
    %2090 = vst [vmem:[#allocation8 + $0x8] sm:$0xf] %v2026
    %2091 = vst [vmem:[#allocation8 + $0xc] sm:$0xff] %v2027
    %2092 = vst [vmem:[#allocation8 + $0x14] sm:$0xf] %v2028
    %2093 = vst [vmem:[#allocation8 + $0x18] sm:$0xff] %v2029
    %2094 = vst [vmem:[#allocation8 + $0x20] sm:$0xf] %v2030
    %2095 = vst [vmem:[#allocation8 + $0x24] sm:$0xff] %v2031
    %2096 = vst [vmem:[#allocation8 + $0x2c] sm:$0xf] %v2032
    %2097 = vst [vmem:[#allocation8 + $0x30] sm:$0xff] %v2033
    %2098 = vst [vmem:[#allocation8 + $0x38] sm:$0xf] %v2034
    %2099 = vst [vmem:[#allocation8 + $0x3c] sm:$0xff] %v2035
    %2100 = vst [vmem:[#allocation8 + $0x44] sm:$0xf] %v2036
    %2101 = vst [vmem:[#allocation8 + $0x48] sm:$0xff] %v2037
    %2102 = vst [vmem:[#allocation8 + $0x50] sm:$0xf] %v2038
    %2103 = vst [vmem:[#allocation8 + $0x54] sm:$0xff] %v2039
    %2104 = vst [vmem:[#allocation8 + $0x5c] sm:$0xf] %v2040
    %2105 = vst [vmem:[#allocation8 + $0x60] sm:$0xff] %v2041
    %2106 = vst [vmem:[#allocation8 + $0x68] sm:$0xf] %v2042
    %2107 = vst [vmem:[#allocation8 + $0x6c] sm:$0xff] %v2043
    %2108 = vst [vmem:[#allocation8 + $0x74] sm:$0xf] %v2044
    %2109 = vst [vmem:[#allocation8 + $0x78] sm:$0xff] %v2045
    %2110 = vst [vmem:[#allocation8 + $0x80] sm:$0xf] %v2046
    %2111 = vst [vmem:[#allocation8 + $0x84] sm:$0xff] %v2047
    %2112 = vst [vmem:[#allocation8 + $0x8c] sm:$0xf] %v2048
    %2113 = vst [vmem:[#allocation8 + $0x90] sm:$0xff] %v2049
    %2114 = vst [vmem:[#allocation8 + $0x98] sm:$0xf] %v2050
    %2115 = vst [vmem:[#allocation8 + $0x9c] sm:$0xff] %v2051
    %2116 = vst [vmem:[#allocation8 + $0xa4] sm:$0xf] %v2052
    %2117 = vst [vmem:[#allocation8 + $0xa8] sm:$0xff] %v2053
    %2118 = vst [vmem:[#allocation8 + $0xb0] sm:$0xf] %v2054
    %2119 = vst [vmem:[#allocation8 + $0xb4] sm:$0xff] %v2055
    %2120 = vst [vmem:[#allocation8 + $0xbc] sm:$0xf] %v2056
    %vm2121 = vcmp.eq.s32.totalorder %v668, 4
    %v2122 = vcvt.s32.f32 %v942
    %v2123 = vcvt.s32.f32 %v944
    %v2124 = vcvt.s32.f32 %v946
    %v2125 = vcvt.s32.f32 %v948
    %v2126 = vcvt.s32.f32 %v950
    %v2127 = vcvt.s32.f32 %v952
    %v2128 = vcvt.s32.f32 %v954
    %v2129 = vcvt.s32.f32 %v956
    %v2130 = vcvt.s32.f32 %v958
    %v2131 = vcvt.s32.f32 %v960
    %v2132 = vcvt.s32.f32 %v962
    %v2133 = vcvt.s32.f32 %v964
    %v2134 = vcvt.s32.f32 %v966
    %v2135 = vcvt.s32.f32 %v968
    %v2136 = vcvt.s32.f32 %v970
    %v2137 = vcvt.s32.f32 %v972
    %v2138 = vsel %vm2121, %v2122, %v1913
    %v2139 = vsel %vm2121, %v2123, %v1914
    %v2140 = vsel %vm2121, %v2124, %v1915
    %v2141 = vsel %vm2121, %v2125, %v1916
    %v2142 = vsel %vm2121, %v2126, %v1917
    %v2143 = vsel %vm2121, %v2127, %v1918
    %v2144 = vsel %vm2121, %v2128, %v1919
    %v2145 = vsel %vm2121, %v2129, %v1920
    %v2146 = vsel %vm2121, %v2130, %v1921
    %v2147 = vsel %vm2121, %v2131, %v1922
    %v2148 = vsel %vm2121, %v2132, %v1923
    %v2149 = vsel %vm2121, %v2133, %v1924
    %v2150 = vsel %vm2121, %v2134, %v1925
    %v2151 = vsel %vm2121, %v2135, %v1926
    %v2152 = vsel %vm2121, %v2136, %v1927
    %v2153 = vsel %vm2121, %v2137, %v1928
    %2154 = vst [vmem:[#allocation9] sm:$0xff] %v2138
    %2155 = vst [vmem:[#allocation9 + $0x8] sm:$0xff] %v2139
    %2156 = vst [vmem:[#allocation9 + $0x10] sm:$0xff] %v2140
    %2157 = vst [vmem:[#allocation9 + $0x18] sm:$0xff] %v2141
    %2158 = vst [vmem:[#allocation9 + $0x20] sm:$0xff] %v2142
    %2159 = vst [vmem:[#allocation9 + $0x28] sm:$0xff] %v2143
    %2160 = vst [vmem:[#allocation9 + $0x30] sm:$0xff] %v2144
    %2161 = vst [vmem:[#allocation9 + $0x38] sm:$0xff] %v2145
    %2162 = vst [vmem:[#allocation9 + $0x40] sm:$0xff] %v2146
    %2163 = vst [vmem:[#allocation9 + $0x48] sm:$0xff] %v2147
    %2164 = vst [vmem:[#allocation9 + $0x50] sm:$0xff] %v2148
    %2165 = vst [vmem:[#allocation9 + $0x58] sm:$0xff] %v2149
    %2166 = vst [vmem:[#allocation9 + $0x60] sm:$0xff] %v2150
    %2167 = vst [vmem:[#allocation9 + $0x68] sm:$0xff] %v2151
    %2168 = vst [vmem:[#allocation9 + $0x70] sm:$0xff] %v2152
    %2169 = vst [vmem:[#allocation9 + $0x78] sm:$0xff] %v2153
    // Predicated region
    $region42: #{tpu_custom_call.1} parent=1 // pred_check
      _
    $region43: #{tpu_custom_call.1} parent=1 // pred_check_branch
      %2171 = sbr.rel (0) target = $region45
    $region44: #{tpu_custom_call.1} parent=1 // pred_region
      %s2173 = ssub.s32 3072, 3072
      %2174 = vsyncadd [#allocation4], %s2173
      %s2175 = sshll.u32 [#allocation8], 4
      %s2176 = int_to_ptr.vmem [resolvable:$true] %s2175
      %2181 = dma.vmem_to_hbm [thread:$0]  %s2176, 3072, %s7, [#allocation4], 192, 192, 12
    $region45: #{tpu_custom_call.1} parent=1 // pred_fallthru
      _
    // Predicated region
    $region46: #{tpu_custom_call.1} parent=1 // pred_check
      _
    $region47: #{tpu_custom_call.1} parent=1 // pred_check_branch
      %2183 = sbr.rel (0) target = $region49
    $region48: #{tpu_custom_call.1} parent=1 // pred_region
      %s2185 = ssub.s32 2048, 2048
      %2186 = vsyncadd [#allocation10], %s2185
      %s2187 = sshll.u32 [#allocation9], 4
      %s2188 = int_to_ptr.vmem [resolvable:$true] %s2187
      %2193 = dma.vmem_to_hbm [thread:$0]  %s2188, 2048, %s8, [#allocation10], 128, 128, 8
    $region49: #{tpu_custom_call.1} parent=1 // pred_fallthru
      _
    // Predicated region
    $region50: #{tpu_custom_call.1} parent=1 // pred_check
      _
    $region51: #{tpu_custom_call.1} parent=1 // pred_check_branch
      %2195 = sbr.rel (0) target = $region53
    $region52: #{tpu_custom_call.1} parent=1 // pred_region
      %2196 = dma.done [#allocation4], 3072
    $region53: #{tpu_custom_call.1} parent=1 // pred_fallthru
      _
    // Predicated region
    $region54: #{tpu_custom_call.1} parent=1 // pred_check
      _
    $region55: #{tpu_custom_call.1} parent=1 // pred_check_branch
      %2198 = sbr.rel (0) target = $region57
    $region56: #{tpu_custom_call.1} parent=1 // pred_region
      %2199 = dma.done [#allocation10], 2048
    $region57: #{tpu_custom_call.1} parent=1 // pred_fallthru
      _
    %2200 = vsyncpa [#allocation3], 1
    %2201 = vsyncpa [#allocation6], 1
    %2202 = vsyncpa [#allocation4], 1
    %2203 = vsyncpa [#allocation10], 1

</llo_original>
